<compile_context>
chip_gen: v6e
topology: v6e:2x2x1
jax: 0.10.0
libtpu: 0.0.40
codegen_flags: <defaults>
</compile_context>

<pallas_src>
import jax
import jax.numpy as jnp
from jax.experimental import pallas as pl
from jax.experimental.pallas import tpu as pltpu

# ---- module hyperparameters (from the PyTorch source) ----
N_EMBD = 120
N_HEADS = 6
HEAD_SIZE = N_EMBD // N_HEADS          # 20
BLOCK_SIZE = 64                        # max context; T <= BLOCK_SIZE
FF_HIDDEN = 4 * N_EMBD                 # 480
LN_EPS = 1e-5
NEG_INF = -1e30                        # finite "minus infinity" (NaN-safe; diagonal always unmasked)


def block_kernel(x_ref,                          # (bblk, T, 120) f32
                 mask_ref,                       # (1, T, T) f32 additive causal mask (0 / -1e30)
                 g1_ref, b1_ref,                 # ln1 gamma/beta      (1, 120) f32
                 wqkv_ref,                       # fused QKV           (120, 360) bf16
                 wp_ref, bp_ref,                 # out proj            (120, 120) bf16, (1, 120) f32
                 g2_ref, b2_ref,                 # ln2 gamma/beta      (1, 120) f32
                 w1_ref, bb1_ref,                # ff linear 1         (120, 480) bf16, (1, 480) f32
                 w2_ref, bb2_ref,                # ff linear 2         (480, 120) bf16, (1, 120) f32
                 o_ref):                         # (bblk, T, 120) f32
    bblk, T, C = x_ref.shape
    R = bblk * T

    x = x_ref[...].astype(jnp.float32).reshape(R, C)          # (R, 120)

    def layernorm(h, gamma, beta):
        mu = jnp.mean(h, axis=-1, keepdims=True)
        d = h - mu
        var = jnp.mean(d * d, axis=-1, keepdims=True)
        return d * jax.lax.rsqrt(var + LN_EPS) * gamma + beta

    # ---------------- multi-head attention on ln1(x) ----------------
    h1 = layernorm(x, g1_ref[...], b1_ref[...])                # (R, 120) f32

    # one fused QKV matmul (bf16 in, f32 accumulate), then cast to bf16 ONCE
    qkv = jnp.dot(h1.astype(jnp.bfloat16), wqkv_ref[...],
                  preferred_element_type=jnp.float32).astype(jnp.bfloat16)     # (R, 360)

    mask = mask_ref[...]                                        # (1, T, T), broadcasts over batch
    scale = 1.0 / (N_EMBD ** 0.5)                               # reference scales by 1/sqrt(C), C = n_embd

    head_outs = []
    for hd in range(N_HEADS):                                   # static unroll over 6 heads
        bq = hd * HEAD_SIZE
        bk = N_EMBD + hd * HEAD_SIZE
        bv = 2 * N_EMBD + hd * HEAD_SIZE
        qh = qkv[:, bq:bq + HEAD_SIZE].reshape(bblk, T, HEAD_SIZE)   # (bblk, T, 20) bf16
        kh = qkv[:, bk:bk + HEAD_SIZE].reshape(bblk, T, HEAD_SIZE)
        vh = qkv[:, bv:bv + HEAD_SIZE].reshape(bblk, T, HEAD_SIZE)

        # per-batch attention: scores are (bblk, T, T), NOT (R, R)
        s = jnp.einsum('btd,bsd->bts', qh, kh,
                       preferred_element_type=jnp.float32) * scale              # (bblk, T, T)
        s = s + mask
        s = s - jnp.max(s, axis=-1, keepdims=True)
        p = jnp.exp(s)
        p = p * pl.reciprocal(jnp.sum(p, axis=-1, keepdims=True), approx=True)
        # attention dropout: identity in inference mode
        oh = jnp.einsum('bts,bsd->btd', p.astype(jnp.bfloat16), vh,
                        preferred_element_type=jnp.float32)                     # (bblk, T, 20)
        head_outs.append(oh.reshape(R, HEAD_SIZE))

    att = jnp.concatenate(head_outs, axis=-1)                   # (R, 120) f32
    att = jnp.dot(att.astype(jnp.bfloat16), wp_ref[...],
                  preferred_element_type=jnp.float32) + bp_ref[...]             # (R, 120)
    # proj dropout: identity in inference mode
    x = x + att                                                 # residual 1

    # ---------------- feed-forward on ln2(x) ----------------
    h2 = layernorm(x, g2_ref[...], b2_ref[...])
    ff = jnp.dot(h2.astype(jnp.bfloat16), w1_ref[...],
                 preferred_element_type=jnp.float32) + bb1_ref[...]             # (R, 480)
    ff = jnp.maximum(ff, 0.0)                                   # ReLU
    ff = jnp.dot(ff.astype(jnp.bfloat16), w2_ref[...],
                 preferred_element_type=jnp.float32) + bb2_ref[...]             # (R, 120)
    # ff dropout: identity in inference mode
    x = x + ff                                                  # residual 2

    o_ref[...] = x.reshape(bblk, T, C).astype(o_ref.dtype)


def prepare_params(params):
    """Fuse / cast the logical (PyTorch-shaped) parameters for the kernel.

    Call ONCE at init and reuse the result (hoisted out of the per-call path)."""
    bf16, f32 = jnp.bfloat16, jnp.float32

    def row(v):
        return jnp.asarray(v, f32).reshape(1, -1)

    def fuse_heads(w):                       # (H, 120, 20) -> (120, 120); head h in cols h*20:(h+1)*20
        return jnp.transpose(jnp.asarray(w, f32), (1, 0, 2)).reshape(N_EMBD, N_HEADS * HEAD_SIZE)

    wqkv = jnp.concatenate(
        [fuse_heads(params["wq"]), fuse_heads(params["wk"]), fuse_heads(params["wv"])],
        axis=1).astype(bf16)                                    # (120, 360)

    return {
        "g1": row(params["g1"]), "b1": row(params["b1"]),
        "g2": row(params["g2"]), "b2": row(params["b2"]),
        "wqkv": wqkv,
        "wp": jnp.asarray(params["wp"], bf16),                  # (120, 120)
        "bp": row(params["bp"]),
        "w1": jnp.asarray(params["w1"], bf16),                  # (120, 480)
        "bb1": row(params["bb1"]),
        "w2": jnp.asarray(params["w2"], bf16),                  # (480, 120)
        "bb2": row(params["bb2"]),
    }


def transformer_block(x, pp):
    """x: (B, T, C) float32 with C == n_embd.  pp: prepared params (see prepare_params)."""
    B, T, C = x.shape
    assert C == N_EMBD and T <= BLOCK_SIZE

    # additive causal mask, resident in VMEM (tiny: T*T <= 64*64 f32)
    tril = jnp.tril(jnp.ones((T, T), dtype=bool))
    mask = jnp.where(tril, 0.0, NEG_INF).astype(jnp.float32).reshape(1, T, T)

    # batch-block choice: ~512 rows per grid step to amortize per-step overhead and fill MXU M.
    rows_target = 512
    bblk = max(1, min(B, rows_target // T))
    steps = pl.cdiv(B, bblk)
    if steps > 1 and steps % 2 == 1:
        # v7x megacore shards the `parallel` axis across 2 TCs; prefer an even step count.
        bblk = pl.cdiv(B, steps + 1)
        steps = pl.cdiv(B, bblk)

    wspec = pl.BlockSpec(memory_space=pltpu.MemorySpace.VMEM)   # mask + weights resident, untiled
    in_specs = [pl.BlockSpec((bblk, T, C), lambda i: (i, 0, 0))] + [wspec] * 12

    out = pl.pallas_call(
        block_kernel,
        out_shape=jax.ShapeDtypeStruct((B, T, C), x.dtype),
        grid=(steps,),
        in_specs=in_specs,
        out_specs=pl.BlockSpec((bblk, T, C), lambda i: (i, 0, 0)),
        compiler_params=pltpu.CompilerParams(
            dimension_semantics=("parallel",),
        ),
    )(x, mask,
      pp["g1"], pp["b1"], pp["wqkv"], pp["wp"], pp["bp"],
      pp["g2"], pp["b2"], pp["w1"], pp["bb1"], pp["w2"], pp["bb2"])

    return out


transformer_block = jax.jit(transformer_block)


def init_params(key):
    """Deterministic synthetic parameters matching the PyTorch module's shapes."""
    ks = jax.random.split(key, 8)
    s = 0.02
    return {
        "g1": jnp.ones((N_EMBD,), jnp.float32),
        "b1": jnp.zeros((N_EMBD,), jnp.float32),
        "g2": jnp.ones((N_EMBD,), jnp.float32),
        "b2": jnp.zeros((N_EMBD,), jnp.float32),
        "wq": s * jax.random.normal(ks[0], (N_HEADS, N_EMBD, HEAD_SIZE), jnp.float32),
        "wk": s * jax.random.normal(ks[1], (N_HEADS, N_EMBD, HEAD_SIZE), jnp.float32),
        "wv": s * jax.random.normal(ks[2], (N_HEADS, N_EMBD, HEAD_SIZE), jnp.float32),
        "wp": s * jax.random.normal(ks[3], (N_EMBD, N_EMBD), jnp.float32),
        "bp": s * jax.random.normal(ks[4], (N_EMBD,), jnp.float32),
        "w1": s * jax.random.normal(ks[5], (N_EMBD, FF_HIDDEN), jnp.float32),
        "bb1": jnp.zeros((FF_HIDDEN,), jnp.float32),
        "w2": s * jax.random.normal(ks[6], (FF_HIDDEN, N_EMBD), jnp.float32),
        "bb2": jnp.zeros((N_EMBD,), jnp.float32),
    }


def block_reference(x, params):
    """Pure-JAX f32 reference matching the PyTorch forward (dropout = identity)."""
    def ln(h, g, b):
        mu = jnp.mean(h, axis=-1, keepdims=True)
        var = jnp.mean((h - mu) ** 2, axis=-1, keepdims=True)
        return (h - mu) * jax.lax.rsqrt(var + LN_EPS) * g + b

    B, T, C = x.shape
    h = ln(x, params["g1"], params["b1"])
    causal = jnp.tril(jnp.ones((T, T), bool))
    scale = 1.0 / (C ** 0.5)
    heads = []
    for hd in range(N_HEADS):
        q = h @ params["wq"][hd]
        k = h @ params["wk"][hd]
        v = h @ params["wv"][hd]
        s = jnp.einsum("btd,bsd->bts", q, k) * scale
        s = jnp.where(causal, s, -jnp.inf)
        p = jax.nn.softmax(s, axis=-1)
        heads.append(jnp.einsum("bts,bsd->btd", p, v))
    att = jnp.concatenate(heads, axis=-1) @ params["wp"] + params["bp"]
    x = x + att
    h2 = ln(x, params["g2"], params["b2"])
    ff = jnp.maximum(h2 @ params["w1"] + params["bb1"], 0.0)
    ff = ff @ params["w2"] + params["bb2"]
    return x + ff


if __name__ == "__main__":
    key = jax.random.PRNGKey(0)
    k_x, k_p = jax.random.split(key)

    B, T = 2, 8
    x = jax.random.normal(k_x, (B, T, N_EMBD), jnp.float32)
    params = init_params(k_p)
    pp = prepare_params(params)            # prepared ONCE, reused across calls

    out = jax.block_until_ready(transformer_block(x, pp))
    assert out.shape == (B, T, N_EMBD) and out.dtype == jnp.float32
    assert bool(jnp.all(jnp.isfinite(out)))

    ref = block_reference(x, params)
    max_err = float(jnp.max(jnp.abs(out - ref)))
    assert max_err < 5e-2, f"mismatch vs reference: {max_err}"

    # TODO(synk): dropout layers are treated as identity (inference mode); training-mode
    # stochastic dropout with PyTorch RNG semantics is not reproduced.
    print("KERNEL_OK")
</pallas_src>

<mosaic_0001>
module attributes {stable_mosaic.version = 11 : i64} {
  func.func @block_kernel(%arg0: i32, %arg1: memref<2x8x120xf32, #tpu.memory_space<vmem>>, %arg2: memref<1x8x8xf32, #tpu.memory_space<vmem>>, %arg3: memref<1x120xf32, #tpu.memory_space<vmem>>, %arg4: memref<1x120xf32, #tpu.memory_space<vmem>>, %arg5: memref<120x360xbf16, #tpu.memory_space<vmem>>, %arg6: memref<120x120xbf16, #tpu.memory_space<vmem>>, %arg7: memref<1x120xf32, #tpu.memory_space<vmem>>, %arg8: memref<1x120xf32, #tpu.memory_space<vmem>>, %arg9: memref<1x120xf32, #tpu.memory_space<vmem>>, %arg10: memref<120x480xbf16, #tpu.memory_space<vmem>>, %arg11: memref<1x480xf32, #tpu.memory_space<vmem>>, %arg12: memref<480x120xbf16, #tpu.memory_space<vmem>>, %arg13: memref<1x120xf32, #tpu.memory_space<vmem>>, %arg14: memref<2x8x120xf32, #tpu.memory_space<vmem>>) attributes {dimension_semantics = [#tpu.dimension_semantics<parallel>], iteration_bounds = array<i64: 1>, scalar_prefetch = 0 : i64, scratch_operands = 0 : i64, tpu.core_type = #tpu.core_type<tc>, window_params = [{transform_indices = @transform_0, window_bounds = array<i64: 2, 8, 120>}, {pipeline_mode = #tpu.pipeline_mode<synchronous>, transform_indices = @transform_1, window_bounds = array<i64: 1, 8, 8>}, {pipeline_mode = #tpu.pipeline_mode<synchronous>, transform_indices = @transform_2, window_bounds = array<i64: 1, 120>}, {pipeline_mode = #tpu.pipeline_mode<synchronous>, transform_indices = @transform_3, window_bounds = array<i64: 1, 120>}, {pipeline_mode = #tpu.pipeline_mode<synchronous>, transform_indices = @transform_4, window_bounds = array<i64: 120, 360>}, {pipeline_mode = #tpu.pipeline_mode<synchronous>, transform_indices = @transform_5, window_bounds = array<i64: 120, 120>}, {pipeline_mode = #tpu.pipeline_mode<synchronous>, transform_indices = @transform_6, window_bounds = array<i64: 1, 120>}, {pipeline_mode = #tpu.pipeline_mode<synchronous>, transform_indices = @transform_7, window_bounds = array<i64: 1, 120>}, {pipeline_mode = #tpu.pipeline_mode<synchronous>, transform_indices = @transform_8, window_bounds = array<i64: 1, 120>}, {pipeline_mode = #tpu.pipeline_mode<synchronous>, transform_indices = @transform_9, window_bounds = array<i64: 120, 480>}, {pipeline_mode = #tpu.pipeline_mode<synchronous>, transform_indices = @transform_10, window_bounds = array<i64: 1, 480>}, {pipeline_mode = #tpu.pipeline_mode<synchronous>, transform_indices = @transform_11, window_bounds = array<i64: 480, 120>}, {pipeline_mode = #tpu.pipeline_mode<synchronous>, transform_indices = @transform_12, window_bounds = array<i64: 1, 120>}, {transform_indices = @transform_13, window_bounds = array<i64: 2, 8, 120>}]} {
    %c0 = arith.constant 0 : index
    %c0_0 = arith.constant 0 : index
    %c0_1 = arith.constant 0 : index
    %0 = vector.load %arg1[%c0, %c0_0, %c0_1] : memref<2x8x120xf32, #tpu.memory_space<vmem>>, vector<2x8x120xf32>
    %1 = vector.shape_cast %0 : vector<2x8x120xf32> to vector<16x120xf32>
    %c0_2 = arith.constant 0 : index
    %c0_3 = arith.constant 0 : index
    %2 = vector.load %arg3[%c0_2, %c0_3] : memref<1x120xf32, #tpu.memory_space<vmem>>, vector<1x120xf32>
    %c0_4 = arith.constant 0 : index
    %c0_5 = arith.constant 0 : index
    %3 = vector.load %arg4[%c0_4, %c0_5] : memref<1x120xf32, #tpu.memory_space<vmem>>, vector<1x120xf32>
    %cst = arith.constant dense<0.000000e+00> : vector<16xf32>
    %4 = vector.multi_reduction <add>, %1, %cst [1] : vector<16x120xf32> to vector<16xf32>
    %5 = vector.shape_cast %4 : vector<16xf32> to vector<16x1xf32>
    %cst_6 = arith.constant 1.200000e+02 : f32
    %6 = vector.broadcast %cst_6 : f32 to vector<16x1xf32>
    %7 = arith.divf %5, %6 : vector<16x1xf32>
    %8 = vector.broadcast %7 : vector<16x1xf32> to vector<16x120xf32>
    %9 = arith.subf %1, %8 : vector<16x120xf32>
    %10 = arith.mulf %9, %9 : vector<16x120xf32>
    %cst_7 = arith.constant dense<0.000000e+00> : vector<16xf32>
    %11 = vector.multi_reduction <add>, %10, %cst_7 [1] : vector<16x120xf32> to vector<16xf32>
    %12 = vector.shape_cast %11 : vector<16xf32> to vector<16x1xf32>
    %cst_8 = arith.constant 1.200000e+02 : f32
    %13 = vector.broadcast %cst_8 : f32 to vector<16x1xf32>
    %14 = arith.divf %12, %13 : vector<16x1xf32>
    %cst_9 = arith.constant 9.99999974E-6 : f32
    %15 = vector.broadcast %cst_9 : f32 to vector<16x1xf32>
    %16 = arith.addf %14, %15 : vector<16x1xf32>
    %17 = math.rsqrt %16 : vector<16x1xf32>
    %18 = vector.broadcast %17 : vector<16x1xf32> to vector<16x120xf32>
    %19 = arith.mulf %9, %18 : vector<16x120xf32>
    %20 = vector.broadcast %2 : vector<1x120xf32> to vector<16x120xf32>
    %21 = arith.mulf %19, %20 : vector<16x120xf32>
    %22 = vector.broadcast %3 : vector<1x120xf32> to vector<16x120xf32>
    %23 = arith.addf %21, %22 : vector<16x120xf32>
    %24 = arith.truncf %23 : vector<16x120xf32> to vector<16x120xbf16>
    %c0_10 = arith.constant 0 : index
    %c0_11 = arith.constant 0 : index
    %25 = vector.load %arg5[%c0_10, %c0_11] : memref<120x360xbf16, #tpu.memory_space<vmem>>, vector<120x360xbf16>
    %cst_12 = arith.constant dense<0.000000e+00> : vector<16x360xf32>
    %26 = tpu.matmul %24, %25, %cst_12 {dimension_numbers = #tpu.dot_dimension_numbers<[1], [0], [0], [1], [0, 0, 1, 1], [], []>} : vector<16x120xbf16>, vector<120x360xbf16>, vector<16x360xf32> -> vector<16x360xf32>
    %27 = arith.truncf %26 : vector<16x360xf32> to vector<16x360xbf16>
    %c0_13 = arith.constant 0 : index
    %c0_14 = arith.constant 0 : index
    %c0_15 = arith.constant 0 : index
    %28 = vector.load %arg2[%c0_13, %c0_14, %c0_15] : memref<1x8x8xf32, #tpu.memory_space<vmem>>, vector<1x8x8xf32>
    %29 = vector.extract_strided_slice %27 {offsets = [0, 0], sizes = [16, 20], strides = [1, 1]} : vector<16x360xbf16> to vector<16x20xbf16>
    %30 = vector.shape_cast %29 : vector<16x20xbf16> to vector<2x8x20xbf16>
    %31 = vector.extract_strided_slice %27 {offsets = [0, 120], sizes = [16, 20], strides = [1, 1]} : vector<16x360xbf16> to vector<16x20xbf16>
    %32 = vector.shape_cast %31 : vector<16x20xbf16> to vector<2x8x20xbf16>
    %33 = vector.extract_strided_slice %27 {offsets = [0, 240], sizes = [16, 20], strides = [1, 1]} : vector<16x360xbf16> to vector<16x20xbf16>
    %34 = vector.shape_cast %33 : vector<16x20xbf16> to vector<2x8x20xbf16>
    "tpu.trace_start"() <{level = 10 : i32, message = "btd,bsd->bts"}> : () -> ()
    %cst_16 = arith.constant dense<0.000000e+00> : vector<2x8x8xf32>
    %35 = tpu.matmul %30, %32, %cst_16 {dimension_numbers = #tpu.dot_dimension_numbers<[2], [2], [1], [1], [0, 0, 0, 1, 1, 1], [0], [0]>} : vector<2x8x20xbf16>, vector<2x8x20xbf16>, vector<2x8x8xf32> -> vector<2x8x8xf32>
    "tpu.trace_stop"() : () -> ()
    %cst_17 = arith.constant 0.0912870914 : f32
    %36 = vector.broadcast %cst_17 : f32 to vector<2x8x8xf32>
    %37 = arith.mulf %35, %36 : vector<2x8x8xf32>
    %38 = vector.broadcast %28 : vector<1x8x8xf32> to vector<2x8x8xf32>
    %39 = arith.addf %37, %38 : vector<2x8x8xf32>
    %cst_18 = arith.constant dense<0xFF800000> : vector<2x8xf32>
    %40 = vector.multi_reduction <maximumf>, %39, %cst_18 [2] : vector<2x8x8xf32> to vector<2x8xf32>
    %41 = vector.shape_cast %40 : vector<2x8xf32> to vector<2x8x1xf32>
    %42 = vector.broadcast %41 : vector<2x8x1xf32> to vector<2x8x8xf32>
    %43 = arith.subf %39, %42 : vector<2x8x8xf32>
    %44 = math.exp %43 : vector<2x8x8xf32>
    %cst_19 = arith.constant dense<0.000000e+00> : vector<2x8xf32>
    %45 = vector.multi_reduction <add>, %44, %cst_19 [2] : vector<2x8x8xf32> to vector<2x8xf32>
    %46 = vector.shape_cast %45 : vector<2x8xf32> to vector<2x8x1xf32>
    %47 = tpu.reciprocal %46 {approx = true} : vector<2x8x1xf32> -> vector<2x8x1xf32>
    %48 = vector.broadcast %47 : vector<2x8x1xf32> to vector<2x8x8xf32>
    %49 = arith.mulf %44, %48 : vector<2x8x8xf32>
    %50 = arith.truncf %49 : vector<2x8x8xf32> to vector<2x8x8xbf16>
    "tpu.trace_start"() <{level = 10 : i32, message = "bts,bsd->btd"}> : () -> ()
    %cst_20 = arith.constant dense<0.000000e+00> : vector<2x8x20xf32>
    %51 = tpu.matmul %50, %34, %cst_20 {dimension_numbers = #tpu.dot_dimension_numbers<[2], [1], [1], [2], [0, 0, 0, 1, 1, 2], [0], [0]>} : vector<2x8x8xbf16>, vector<2x8x20xbf16>, vector<2x8x20xf32> -> vector<2x8x20xf32>
    "tpu.trace_stop"() : () -> ()
    %52 = vector.shape_cast %51 : vector<2x8x20xf32> to vector<16x20xf32>
    %53 = vector.extract_strided_slice %27 {offsets = [0, 20], sizes = [16, 20], strides = [1, 1]} : vector<16x360xbf16> to vector<16x20xbf16>
    %54 = vector.shape_cast %53 : vector<16x20xbf16> to vector<2x8x20xbf16>
    %55 = vector.extract_strided_slice %27 {offsets = [0, 140], sizes = [16, 20], strides = [1, 1]} : vector<16x360xbf16> to vector<16x20xbf16>
    %56 = vector.shape_cast %55 : vector<16x20xbf16> to vector<2x8x20xbf16>
    %57 = vector.extract_strided_slice %27 {offsets = [0, 260], sizes = [16, 20], strides = [1, 1]} : vector<16x360xbf16> to vector<16x20xbf16>
    %58 = vector.shape_cast %57 : vector<16x20xbf16> to vector<2x8x20xbf16>
    "tpu.trace_start"() <{level = 10 : i32, message = "btd,bsd->bts"}> : () -> ()
    %cst_21 = arith.constant dense<0.000000e+00> : vector<2x8x8xf32>
    %59 = tpu.matmul %54, %56, %cst_21 {dimension_numbers = #tpu.dot_dimension_numbers<[2], [2], [1], [1], [0, 0, 0, 1, 1, 1], [0], [0]>} : vector<2x8x20xbf16>, vector<2x8x20xbf16>, vector<2x8x8xf32> -> vector<2x8x8xf32>
    "tpu.trace_stop"() : () -> ()
    %cst_22 = arith.constant 0.0912870914 : f32
    %60 = vector.broadcast %cst_22 : f32 to vector<2x8x8xf32>
    %61 = arith.mulf %59, %60 : vector<2x8x8xf32>
    %62 = vector.broadcast %28 : vector<1x8x8xf32> to vector<2x8x8xf32>
    %63 = arith.addf %61, %62 : vector<2x8x8xf32>
    %cst_23 = arith.constant dense<0xFF800000> : vector<2x8xf32>
    %64 = vector.multi_reduction <maximumf>, %63, %cst_23 [2] : vector<2x8x8xf32> to vector<2x8xf32>
    %65 = vector.shape_cast %64 : vector<2x8xf32> to vector<2x8x1xf32>
    %66 = vector.broadcast %65 : vector<2x8x1xf32> to vector<2x8x8xf32>
    %67 = arith.subf %63, %66 : vector<2x8x8xf32>
    %68 = math.exp %67 : vector<2x8x8xf32>
    %cst_24 = arith.constant dense<0.000000e+00> : vector<2x8xf32>
    %69 = vector.multi_reduction <add>, %68, %cst_24 [2] : vector<2x8x8xf32> to vector<2x8xf32>
    %70 = vector.shape_cast %69 : vector<2x8xf32> to vector<2x8x1xf32>
    %71 = tpu.reciprocal %70 {approx = true} : vector<2x8x1xf32> -> vector<2x8x1xf32>
    %72 = vector.broadcast %71 : vector<2x8x1xf32> to vector<2x8x8xf32>
    %73 = arith.mulf %68, %72 : vector<2x8x8xf32>
    %74 = arith.truncf %73 : vector<2x8x8xf32> to vector<2x8x8xbf16>
    "tpu.trace_start"() <{level = 10 : i32, message = "bts,bsd->btd"}> : () -> ()
    %cst_25 = arith.constant dense<0.000000e+00> : vector<2x8x20xf32>
    %75 = tpu.matmul %74, %58, %cst_25 {dimension_numbers = #tpu.dot_dimension_numbers<[2], [1], [1], [2], [0, 0, 0, 1, 1, 2], [0], [0]>} : vector<2x8x8xbf16>, vector<2x8x20xbf16>, vector<2x8x20xf32> -> vector<2x8x20xf32>
    "tpu.trace_stop"() : () -> ()
    %76 = vector.shape_cast %75 : vector<2x8x20xf32> to vector<16x20xf32>
    %77 = vector.extract_strided_slice %27 {offsets = [0, 40], sizes = [16, 20], strides = [1, 1]} : vector<16x360xbf16> to vector<16x20xbf16>
    %78 = vector.shape_cast %77 : vector<16x20xbf16> to vector<2x8x20xbf16>
    %79 = vector.extract_strided_slice %27 {offsets = [0, 160], sizes = [16, 20], strides = [1, 1]} : vector<16x360xbf16> to vector<16x20xbf16>
    %80 = vector.shape_cast %79 : vector<16x20xbf16> to vector<2x8x20xbf16>
    %81 = vector.extract_strided_slice %27 {offsets = [0, 280], sizes = [16, 20], strides = [1, 1]} : vector<16x360xbf16> to vector<16x20xbf16>
    %82 = vector.shape_cast %81 : vector<16x20xbf16> to vector<2x8x20xbf16>
    "tpu.trace_start"() <{level = 10 : i32, message = "btd,bsd->bts"}> : () -> ()
    %cst_26 = arith.constant dense<0.000000e+00> : vector<2x8x8xf32>
    %83 = tpu.matmul %78, %80, %cst_26 {dimension_numbers = #tpu.dot_dimension_numbers<[2], [2], [1], [1], [0, 0, 0, 1, 1, 1], [0], [0]>} : vector<2x8x20xbf16>, vector<2x8x20xbf16>, vector<2x8x8xf32> -> vector<2x8x8xf32>
    "tpu.trace_stop"() : () -> ()
    %cst_27 = arith.constant 0.0912870914 : f32
    %84 = vector.broadcast %cst_27 : f32 to vector<2x8x8xf32>
    %85 = arith.mulf %83, %84 : vector<2x8x8xf32>
    %86 = vector.broadcast %28 : vector<1x8x8xf32> to vector<2x8x8xf32>
    %87 = arith.addf %85, %86 : vector<2x8x8xf32>
    %cst_28 = arith.constant dense<0xFF800000> : vector<2x8xf32>
    %88 = vector.multi_reduction <maximumf>, %87, %cst_28 [2] : vector<2x8x8xf32> to vector<2x8xf32>
    %89 = vector.shape_cast %88 : vector<2x8xf32> to vector<2x8x1xf32>
    %90 = vector.broadcast %89 : vector<2x8x1xf32> to vector<2x8x8xf32>
    %91 = arith.subf %87, %90 : vector<2x8x8xf32>
    %92 = math.exp %91 : vector<2x8x8xf32>
    %cst_29 = arith.constant dense<0.000000e+00> : vector<2x8xf32>
    %93 = vector.multi_reduction <add>, %92, %cst_29 [2] : vector<2x8x8xf32> to vector<2x8xf32>
    %94 = vector.shape_cast %93 : vector<2x8xf32> to vector<2x8x1xf32>
    %95 = tpu.reciprocal %94 {approx = true} : vector<2x8x1xf32> -> vector<2x8x1xf32>
    %96 = vector.broadcast %95 : vector<2x8x1xf32> to vector<2x8x8xf32>
    %97 = arith.mulf %92, %96 : vector<2x8x8xf32>
    %98 = arith.truncf %97 : vector<2x8x8xf32> to vector<2x8x8xbf16>
    "tpu.trace_start"() <{level = 10 : i32, message = "bts,bsd->btd"}> : () -> ()
    %cst_30 = arith.constant dense<0.000000e+00> : vector<2x8x20xf32>
    %99 = tpu.matmul %98, %82, %cst_30 {dimension_numbers = #tpu.dot_dimension_numbers<[2], [1], [1], [2], [0, 0, 0, 1, 1, 2], [0], [0]>} : vector<2x8x8xbf16>, vector<2x8x20xbf16>, vector<2x8x20xf32> -> vector<2x8x20xf32>
    "tpu.trace_stop"() : () -> ()
    %100 = vector.shape_cast %99 : vector<2x8x20xf32> to vector<16x20xf32>
    %101 = vector.extract_strided_slice %27 {offsets = [0, 60], sizes = [16, 20], strides = [1, 1]} : vector<16x360xbf16> to vector<16x20xbf16>
    %102 = vector.shape_cast %101 : vector<16x20xbf16> to vector<2x8x20xbf16>
    %103 = vector.extract_strided_slice %27 {offsets = [0, 180], sizes = [16, 20], strides = [1, 1]} : vector<16x360xbf16> to vector<16x20xbf16>
    %104 = vector.shape_cast %103 : vector<16x20xbf16> to vector<2x8x20xbf16>
    %105 = vector.extract_strided_slice %27 {offsets = [0, 300], sizes = [16, 20], strides = [1, 1]} : vector<16x360xbf16> to vector<16x20xbf16>
    %106 = vector.shape_cast %105 : vector<16x20xbf16> to vector<2x8x20xbf16>
    "tpu.trace_start"() <{level = 10 : i32, message = "btd,bsd->bts"}> : () -> ()
    %cst_31 = arith.constant dense<0.000000e+00> : vector<2x8x8xf32>
    %107 = tpu.matmul %102, %104, %cst_31 {dimension_numbers = #tpu.dot_dimension_numbers<[2], [2], [1], [1], [0, 0, 0, 1, 1, 1], [0], [0]>} : vector<2x8x20xbf16>, vector<2x8x20xbf16>, vector<2x8x8xf32> -> vector<2x8x8xf32>
    "tpu.trace_stop"() : () -> ()
    %cst_32 = arith.constant 0.0912870914 : f32
    %108 = vector.broadcast %cst_32 : f32 to vector<2x8x8xf32>
    %109 = arith.mulf %107, %108 : vector<2x8x8xf32>
    %110 = vector.broadcast %28 : vector<1x8x8xf32> to vector<2x8x8xf32>
    %111 = arith.addf %109, %110 : vector<2x8x8xf32>
    %cst_33 = arith.constant dense<0xFF800000> : vector<2x8xf32>
    %112 = vector.multi_reduction <maximumf>, %111, %cst_33 [2] : vector<2x8x8xf32> to vector<2x8xf32>
    %113 = vector.shape_cast %112 : vector<2x8xf32> to vector<2x8x1xf32>
    %114 = vector.broadcast %113 : vector<2x8x1xf32> to vector<2x8x8xf32>
    %115 = arith.subf %111, %114 : vector<2x8x8xf32>
    %116 = math.exp %115 : vector<2x8x8xf32>
    %cst_34 = arith.constant dense<0.000000e+00> : vector<2x8xf32>
    %117 = vector.multi_reduction <add>, %116, %cst_34 [2] : vector<2x8x8xf32> to vector<2x8xf32>
    %118 = vector.shape_cast %117 : vector<2x8xf32> to vector<2x8x1xf32>
    %119 = tpu.reciprocal %118 {approx = true} : vector<2x8x1xf32> -> vector<2x8x1xf32>
    %120 = vector.broadcast %119 : vector<2x8x1xf32> to vector<2x8x8xf32>
    %121 = arith.mulf %116, %120 : vector<2x8x8xf32>
    %122 = arith.truncf %121 : vector<2x8x8xf32> to vector<2x8x8xbf16>
    "tpu.trace_start"() <{level = 10 : i32, message = "bts,bsd->btd"}> : () -> ()
    %cst_35 = arith.constant dense<0.000000e+00> : vector<2x8x20xf32>
    %123 = tpu.matmul %122, %106, %cst_35 {dimension_numbers = #tpu.dot_dimension_numbers<[2], [1], [1], [2], [0, 0, 0, 1, 1, 2], [0], [0]>} : vector<2x8x8xbf16>, vector<2x8x20xbf16>, vector<2x8x20xf32> -> vector<2x8x20xf32>
    "tpu.trace_stop"() : () -> ()
    %124 = vector.shape_cast %123 : vector<2x8x20xf32> to vector<16x20xf32>
    %125 = vector.extract_strided_slice %27 {offsets = [0, 80], sizes = [16, 20], strides = [1, 1]} : vector<16x360xbf16> to vector<16x20xbf16>
    %126 = vector.shape_cast %125 : vector<16x20xbf16> to vector<2x8x20xbf16>
    %127 = vector.extract_strided_slice %27 {offsets = [0, 200], sizes = [16, 20], strides = [1, 1]} : vector<16x360xbf16> to vector<16x20xbf16>
    %128 = vector.shape_cast %127 : vector<16x20xbf16> to vector<2x8x20xbf16>
    %129 = vector.extract_strided_slice %27 {offsets = [0, 320], sizes = [16, 20], strides = [1, 1]} : vector<16x360xbf16> to vector<16x20xbf16>
    %130 = vector.shape_cast %129 : vector<16x20xbf16> to vector<2x8x20xbf16>
    "tpu.trace_start"() <{level = 10 : i32, message = "btd,bsd->bts"}> : () -> ()
    %cst_36 = arith.constant dense<0.000000e+00> : vector<2x8x8xf32>
    %131 = tpu.matmul %126, %128, %cst_36 {dimension_numbers = #tpu.dot_dimension_numbers<[2], [2], [1], [1], [0, 0, 0, 1, 1, 1], [0], [0]>} : vector<2x8x20xbf16>, vector<2x8x20xbf16>, vector<2x8x8xf32> -> vector<2x8x8xf32>
    "tpu.trace_stop"() : () -> ()
    %cst_37 = arith.constant 0.0912870914 : f32
    %132 = vector.broadcast %cst_37 : f32 to vector<2x8x8xf32>
    %133 = arith.mulf %131, %132 : vector<2x8x8xf32>
    %134 = vector.broadcast %28 : vector<1x8x8xf32> to vector<2x8x8xf32>
    %135 = arith.addf %133, %134 : vector<2x8x8xf32>
    %cst_38 = arith.constant dense<0xFF800000> : vector<2x8xf32>
    %136 = vector.multi_reduction <maximumf>, %135, %cst_38 [2] : vector<2x8x8xf32> to vector<2x8xf32>
    %137 = vector.shape_cast %136 : vector<2x8xf32> to vector<2x8x1xf32>
    %138 = vector.broadcast %137 : vector<2x8x1xf32> to vector<2x8x8xf32>
    %139 = arith.subf %135, %138 : vector<2x8x8xf32>
    %140 = math.exp %139 : vector<2x8x8xf32>
    %cst_39 = arith.constant dense<0.000000e+00> : vector<2x8xf32>
    %141 = vector.multi_reduction <add>, %140, %cst_39 [2] : vector<2x8x8xf32> to vector<2x8xf32>
    %142 = vector.shape_cast %141 : vector<2x8xf32> to vector<2x8x1xf32>
    %143 = tpu.reciprocal %142 {approx = true} : vector<2x8x1xf32> -> vector<2x8x1xf32>
    %144 = vector.broadcast %143 : vector<2x8x1xf32> to vector<2x8x8xf32>
    %145 = arith.mulf %140, %144 : vector<2x8x8xf32>
    %146 = arith.truncf %145 : vector<2x8x8xf32> to vector<2x8x8xbf16>
    "tpu.trace_start"() <{level = 10 : i32, message = "bts,bsd->btd"}> : () -> ()
    %cst_40 = arith.constant dense<0.000000e+00> : vector<2x8x20xf32>
    %147 = tpu.matmul %146, %130, %cst_40 {dimension_numbers = #tpu.dot_dimension_numbers<[2], [1], [1], [2], [0, 0, 0, 1, 1, 2], [0], [0]>} : vector<2x8x8xbf16>, vector<2x8x20xbf16>, vector<2x8x20xf32> -> vector<2x8x20xf32>
    "tpu.trace_stop"() : () -> ()
    %148 = vector.shape_cast %147 : vector<2x8x20xf32> to vector<16x20xf32>
    %149 = vector.extract_strided_slice %27 {offsets = [0, 100], sizes = [16, 20], strides = [1, 1]} : vector<16x360xbf16> to vector<16x20xbf16>
    %150 = vector.shape_cast %149 : vector<16x20xbf16> to vector<2x8x20xbf16>
    %151 = vector.extract_strided_slice %27 {offsets = [0, 220], sizes = [16, 20], strides = [1, 1]} : vector<16x360xbf16> to vector<16x20xbf16>
    %152 = vector.shape_cast %151 : vector<16x20xbf16> to vector<2x8x20xbf16>
    %153 = vector.extract_strided_slice %27 {offsets = [0, 340], sizes = [16, 20], strides = [1, 1]} : vector<16x360xbf16> to vector<16x20xbf16>
    %154 = vector.shape_cast %153 : vector<16x20xbf16> to vector<2x8x20xbf16>
    "tpu.trace_start"() <{level = 10 : i32, message = "btd,bsd->bts"}> : () -> ()
    %cst_41 = arith.constant dense<0.000000e+00> : vector<2x8x8xf32>
    %155 = tpu.matmul %150, %152, %cst_41 {dimension_numbers = #tpu.dot_dimension_numbers<[2], [2], [1], [1], [0, 0, 0, 1, 1, 1], [0], [0]>} : vector<2x8x20xbf16>, vector<2x8x20xbf16>, vector<2x8x8xf32> -> vector<2x8x8xf32>
    "tpu.trace_stop"() : () -> ()
    %cst_42 = arith.constant 0.0912870914 : f32
    %156 = vector.broadcast %cst_42 : f32 to vector<2x8x8xf32>
    %157 = arith.mulf %155, %156 : vector<2x8x8xf32>
    %158 = vector.broadcast %28 : vector<1x8x8xf32> to vector<2x8x8xf32>
    %159 = arith.addf %157, %158 : vector<2x8x8xf32>
    %cst_43 = arith.constant dense<0xFF800000> : vector<2x8xf32>
    %160 = vector.multi_reduction <maximumf>, %159, %cst_43 [2] : vector<2x8x8xf32> to vector<2x8xf32>
    %161 = vector.shape_cast %160 : vector<2x8xf32> to vector<2x8x1xf32>
    %162 = vector.broadcast %161 : vector<2x8x1xf32> to vector<2x8x8xf32>
    %163 = arith.subf %159, %162 : vector<2x8x8xf32>
    %164 = math.exp %163 : vector<2x8x8xf32>
    %cst_44 = arith.constant dense<0.000000e+00> : vector<2x8xf32>
    %165 = vector.multi_reduction <add>, %164, %cst_44 [2] : vector<2x8x8xf32> to vector<2x8xf32>
    %166 = vector.shape_cast %165 : vector<2x8xf32> to vector<2x8x1xf32>
    %167 = tpu.reciprocal %166 {approx = true} : vector<2x8x1xf32> -> vector<2x8x1xf32>
    %168 = vector.broadcast %167 : vector<2x8x1xf32> to vector<2x8x8xf32>
    %169 = arith.mulf %164, %168 : vector<2x8x8xf32>
    %170 = arith.truncf %169 : vector<2x8x8xf32> to vector<2x8x8xbf16>
    "tpu.trace_start"() <{level = 10 : i32, message = "bts,bsd->btd"}> : () -> ()
    %cst_45 = arith.constant dense<0.000000e+00> : vector<2x8x20xf32>
    %171 = tpu.matmul %170, %154, %cst_45 {dimension_numbers = #tpu.dot_dimension_numbers<[2], [1], [1], [2], [0, 0, 0, 1, 1, 2], [0], [0]>} : vector<2x8x8xbf16>, vector<2x8x20xbf16>, vector<2x8x20xf32> -> vector<2x8x20xf32>
    "tpu.trace_stop"() : () -> ()
    %172 = vector.shape_cast %171 : vector<2x8x20xf32> to vector<16x20xf32>
    %173 = tpu.concatenate %52, %76, %100, %124, %148, %172 in 1 : vector<16x20xf32>, vector<16x20xf32>, vector<16x20xf32>, vector<16x20xf32>, vector<16x20xf32>, vector<16x20xf32> -> vector<16x120xf32>
    %174 = arith.truncf %173 : vector<16x120xf32> to vector<16x120xbf16>
    %c0_46 = arith.constant 0 : index
    %c0_47 = arith.constant 0 : index
    %175 = vector.load %arg6[%c0_46, %c0_47] : memref<120x120xbf16, #tpu.memory_space<vmem>>, vector<120x120xbf16>
    %cst_48 = arith.constant dense<0.000000e+00> : vector<16x120xf32>
    %176 = tpu.matmul %174, %175, %cst_48 {dimension_numbers = #tpu.dot_dimension_numbers<[1], [0], [0], [1], [0, 0, 1, 1], [], []>} : vector<16x120xbf16>, vector<120x120xbf16>, vector<16x120xf32> -> vector<16x120xf32>
    %c0_49 = arith.constant 0 : index
    %c0_50 = arith.constant 0 : index
    %177 = vector.load %arg7[%c0_49, %c0_50] : memref<1x120xf32, #tpu.memory_space<vmem>>, vector<1x120xf32>
    %178 = vector.broadcast %177 : vector<1x120xf32> to vector<16x120xf32>
    %179 = arith.addf %176, %178 : vector<16x120xf32>
    %180 = arith.addf %1, %179 : vector<16x120xf32>
    %c0_51 = arith.constant 0 : index
    %c0_52 = arith.constant 0 : index
    %181 = vector.load %arg8[%c0_51, %c0_52] : memref<1x120xf32, #tpu.memory_space<vmem>>, vector<1x120xf32>
    %c0_53 = arith.constant 0 : index
    %c0_54 = arith.constant 0 : index
    %182 = vector.load %arg9[%c0_53, %c0_54] : memref<1x120xf32, #tpu.memory_space<vmem>>, vector<1x120xf32>
    %cst_55 = arith.constant dense<0.000000e+00> : vector<16xf32>
    %183 = vector.multi_reduction <add>, %180, %cst_55 [1] : vector<16x120xf32> to vector<16xf32>
    %184 = vector.shape_cast %183 : vector<16xf32> to vector<16x1xf32>
    %cst_56 = arith.constant 1.200000e+02 : f32
    %185 = vector.broadcast %cst_56 : f32 to vector<16x1xf32>
    %186 = arith.divf %184, %185 : vector<16x1xf32>
    %187 = vector.broadcast %186 : vector<16x1xf32> to vector<16x120xf32>
    %188 = arith.subf %180, %187 : vector<16x120xf32>
    %189 = arith.mulf %188, %188 : vector<16x120xf32>
    %cst_57 = arith.constant dense<0.000000e+00> : vector<16xf32>
    %190 = vector.multi_reduction <add>, %189, %cst_57 [1] : vector<16x120xf32> to vector<16xf32>
    %191 = vector.shape_cast %190 : vector<16xf32> to vector<16x1xf32>
    %cst_58 = arith.constant 1.200000e+02 : f32
    %192 = vector.broadcast %cst_58 : f32 to vector<16x1xf32>
    %193 = arith.divf %191, %192 : vector<16x1xf32>
    %cst_59 = arith.constant 9.99999974E-6 : f32
    %194 = vector.broadcast %cst_59 : f32 to vector<16x1xf32>
    %195 = arith.addf %193, %194 : vector<16x1xf32>
    %196 = math.rsqrt %195 : vector<16x1xf32>
    %197 = vector.broadcast %196 : vector<16x1xf32> to vector<16x120xf32>
    %198 = arith.mulf %188, %197 : vector<16x120xf32>
    %199 = vector.broadcast %181 : vector<1x120xf32> to vector<16x120xf32>
    %200 = arith.mulf %198, %199 : vector<16x120xf32>
    %201 = vector.broadcast %182 : vector<1x120xf32> to vector<16x120xf32>
    %202 = arith.addf %200, %201 : vector<16x120xf32>
    %203 = arith.truncf %202 : vector<16x120xf32> to vector<16x120xbf16>
    %c0_60 = arith.constant 0 : index
    %c0_61 = arith.constant 0 : index
    %204 = vector.load %arg10[%c0_60, %c0_61] : memref<120x480xbf16, #tpu.memory_space<vmem>>, vector<120x480xbf16>
    %cst_62 = arith.constant dense<0.000000e+00> : vector<16x480xf32>
    %205 = tpu.matmul %203, %204, %cst_62 {dimension_numbers = #tpu.dot_dimension_numbers<[1], [0], [0], [1], [0, 0, 1, 1], [], []>} : vector<16x120xbf16>, vector<120x480xbf16>, vector<16x480xf32> -> vector<16x480xf32>
    %c0_63 = arith.constant 0 : index
    %c0_64 = arith.constant 0 : index
    %206 = vector.load %arg11[%c0_63, %c0_64] : memref<1x480xf32, #tpu.memory_space<vmem>>, vector<1x480xf32>
    %207 = vector.broadcast %206 : vector<1x480xf32> to vector<16x480xf32>
    %208 = arith.addf %205, %207 : vector<16x480xf32>
    %cst_65 = arith.constant 0.000000e+00 : f32
    %209 = vector.broadcast %cst_65 : f32 to vector<16x480xf32>
    %210 = arith.maximumf %208, %209 : vector<16x480xf32>
    %211 = arith.truncf %210 : vector<16x480xf32> to vector<16x480xbf16>
    %c0_66 = arith.constant 0 : index
    %c0_67 = arith.constant 0 : index
    %212 = vector.load %arg12[%c0_66, %c0_67] : memref<480x120xbf16, #tpu.memory_space<vmem>>, vector<480x120xbf16>
    %cst_68 = arith.constant dense<0.000000e+00> : vector<16x120xf32>
    %213 = tpu.matmul %211, %212, %cst_68 {dimension_numbers = #tpu.dot_dimension_numbers<[1], [0], [0], [1], [0, 0, 1, 1], [], []>} : vector<16x480xbf16>, vector<480x120xbf16>, vector<16x120xf32> -> vector<16x120xf32>
    %c0_69 = arith.constant 0 : index
    %c0_70 = arith.constant 0 : index
    %214 = vector.load %arg13[%c0_69, %c0_70] : memref<1x120xf32, #tpu.memory_space<vmem>>, vector<1x120xf32>
    %215 = vector.broadcast %214 : vector<1x120xf32> to vector<16x120xf32>
    %216 = arith.addf %213, %215 : vector<16x120xf32>
    %217 = arith.addf %180, %216 : vector<16x120xf32>
    %218 = vector.shape_cast %217 : vector<16x120xf32> to vector<2x8x120xf32>
    %c0_71 = arith.constant 0 : index
    %c0_72 = arith.constant 0 : index
    %c0_73 = arith.constant 0 : index
    %219 = vector.load %arg14[%c0_71, %c0_72, %c0_73] : memref<2x8x120xf32, #tpu.memory_space<vmem>>, vector<2x8x120xf32>
    tpu.vector_store %arg14[%c0_71, %c0_72, %c0_73], %218 {strides = array<i32>} : memref<2x8x120xf32, #tpu.memory_space<vmem>>, vector<2x8x120xf32>,
    return
  }
  func.func @transform_0(%arg0: i32) -> (i32, i32, i32) {
    %c0_i32 = arith.constant 0 : i32
    %c0_i32_0 = arith.constant 0 : i32
    %c0_i32_1 = arith.constant 0 : i32
    return %arg0, %c0_i32, %c0_i32_0 : i32, i32, i32
  }
  func.func @transform_1(%arg0: i32) -> (i32, i32, i32) {
    %c0_i32 = arith.constant 0 : i32
    %c0_i32_0 = arith.constant 0 : i32
    %c0_i32_1 = arith.constant 0 : i32
    %c0_i32_2 = arith.constant 0 : i32
    return %c0_i32, %c0_i32_0, %c0_i32_1 : i32, i32, i32
  }
  func.func @transform_2(%arg0: i32) -> (i32, i32) {
    %c0_i32 = arith.constant 0 : i32
    %c0_i32_0 = arith.constant 0 : i32
    %c0_i32_1 = arith.constant 0 : i32
    return %c0_i32, %c0_i32_0 : i32, i32
  }
  func.func @transform_3(%arg0: i32) -> (i32, i32) {
    %c0_i32 = arith.constant 0 : i32
    %c0_i32_0 = arith.constant 0 : i32
    %c0_i32_1 = arith.constant 0 : i32
    return %c0_i32, %c0_i32_0 : i32, i32
  }
  func.func @transform_4(%arg0: i32) -> (i32, i32) {
    %c0_i32 = arith.constant 0 : i32
    %c0_i32_0 = arith.constant 0 : i32
    %c0_i32_1 = arith.constant 0 : i32
    return %c0_i32, %c0_i32_0 : i32, i32
  }
  func.func @transform_5(%arg0: i32) -> (i32, i32) {
    %c0_i32 = arith.constant 0 : i32
    %c0_i32_0 = arith.constant 0 : i32
    %c0_i32_1 = arith.constant 0 : i32
    return %c0_i32, %c0_i32_0 : i32, i32
  }
  func.func @transform_6(%arg0: i32) -> (i32, i32) {
    %c0_i32 = arith.constant 0 : i32
    %c0_i32_0 = arith.constant 0 : i32
    %c0_i32_1 = arith.constant 0 : i32
    return %c0_i32, %c0_i32_0 : i32, i32
  }
  func.func @transform_7(%arg0: i32) -> (i32, i32) {
    %c0_i32 = arith.constant 0 : i32
    %c0_i32_0 = arith.constant 0 : i32
    %c0_i32_1 = arith.constant 0 : i32
    return %c0_i32, %c0_i32_0 : i32, i32
  }
  func.func @transform_8(%arg0: i32) -> (i32, i32) {
    %c0_i32 = arith.constant 0 : i32
    %c0_i32_0 = arith.constant 0 : i32
    %c0_i32_1 = arith.constant 0 : i32
    return %c0_i32, %c0_i32_0 : i32, i32
  }
  func.func @transform_9(%arg0: i32) -> (i32, i32) {
    %c0_i32 = arith.constant 0 : i32
    %c0_i32_0 = arith.constant 0 : i32
    %c0_i32_1 = arith.constant 0 : i32
    return %c0_i32, %c0_i32_0 : i32, i32
  }
  func.func @transform_10(%arg0: i32) -> (i32, i32) {
    %c0_i32 = arith.constant 0 : i32
    %c0_i32_0 = arith.constant 0 : i32
    %c0_i32_1 = arith.constant 0 : i32
    return %c0_i32, %c0_i32_0 : i32, i32
  }
  func.func @transform_11(%arg0: i32) -> (i32, i32) {
    %c0_i32 = arith.constant 0 : i32
    %c0_i32_0 = arith.constant 0 : i32
    %c0_i32_1 = arith.constant 0 : i32
    return %c0_i32, %c0_i32_0 : i32, i32
  }
  func.func @transform_12(%arg0: i32) -> (i32, i32) {
    %c0_i32 = arith.constant 0 : i32
    %c0_i32_0 = arith.constant 0 : i32
    %c0_i32_1 = arith.constant 0 : i32
    return %c0_i32, %c0_i32_0 : i32, i32
  }
  func.func @transform_13(%arg0: i32) -> (i32, i32, i32) {
    %c0_i32 = arith.constant 0 : i32
    %c0_i32_0 = arith.constant 0 : i32
    %c0_i32_1 = arith.constant 0 : i32
    return %arg0, %c0_i32, %c0_i32_0 : i32, i32, i32
  }
}

</mosaic_0001>

<llo_original>
// kernel: transformer_block.1
$region0: #{transformer_block.1}
  #allocation0 [shape = 'u32[]', space=smem, size = 0x4, offset = 0x4, fixed_abs, tag = 'smem constant byte address 0x4 - core index']
  #allocation1 [shape = 'u32[144,128]{1,0:T(1,128)}', space=vmem, size = 0x12000, scoped, tag = 'internal scratch']
  %s0 = inlined_call_operand.hbm [shape: f32[2,8,120], index: 0, kind: input, shape index: {}]
  %s1 = inlined_call_operand.vmem [shape: f32[1,8,8], index: 1, kind: input, shape index: {}]
  %s2 = inlined_call_operand.vmem [shape: f32[1,120], index: 2, kind: input, shape index: {}]
  %s3 = inlined_call_operand.vmem [shape: f32[1,120], index: 3, kind: input, shape index: {}]
  %s4 = inlined_call_operand.hbm [shape: bf16[120,360], index: 4, kind: input, shape index: {}]
  %s5 = inlined_call_operand.hbm [shape: bf16[120,120], index: 5, kind: input, shape index: {}]
  %s6 = inlined_call_operand.vmem [shape: f32[1,120], index: 6, kind: input, shape index: {}]
  %s7 = inlined_call_operand.vmem [shape: f32[1,120], index: 7, kind: input, shape index: {}]
  %s8 = inlined_call_operand.vmem [shape: f32[1,120], index: 8, kind: input, shape index: {}]
  %s9 = inlined_call_operand.hbm [shape: bf16[120,480], index: 9, kind: input, shape index: {}]
  %s10 = inlined_call_operand.vmem [shape: f32[1,480], index: 10, kind: input, shape index: {}]
  %s11 = inlined_call_operand.hbm [shape: bf16[480,120], index: 11, kind: input, shape index: {}]
  %s12 = inlined_call_operand.vmem [shape: f32[1,120], index: 12, kind: input, shape index: {}]
  %s13 = inlined_call_operand.hbm [shape: f32[2,8,120], index: 13, kind: output, shape index: {}]
  %s14 = sld [smem:[#allocation0]]
  $region82: #{transformer_block.1} parent=0
    _
  %s16 = ssub.s32 1, %s14
  %s17 = scalar_select 0, %s16, %s14
  $region1: #{transformer_block.1} parent=0
    #allocation2 [shape = 'u8[8192]{0}', space=vmem, size = 0x2000, scoped, tag = 'input window, operand 0, single buffered']
    #allocation3 [shape = 's32[1]{0}', space=sflag, size = 0x4, scoped, tag = 'scoped memory for transformer_block.1']
    #allocation4 [shape = 's32[1]{0}', space=sflag, size = 0x4, scoped, tag = 'scoped memory for transformer_block.1']
    #allocation5 [shape = 'u8[92160]{0}', space=vmem, size = 0x16800, scoped, tag = 'input window, operand 4, single buffered']
    #allocation6 [shape = 's32[1]{0}', space=sflag, size = 0x4, scoped, tag = 'scoped memory for transformer_block.1']
    #allocation7 [shape = 'u8[30720]{0}', space=vmem, size = 0x7800, scoped, tag = 'input window, operand 5, single buffered']
    #allocation8 [shape = 'u8[122880]{0}', space=vmem, size = 0x1e000, scoped, tag = 'input window, operand 9, single buffered']
    #allocation9 [shape = 's32[1]{0}', space=sflag, size = 0x4, scoped, tag = 'scoped memory for transformer_block.1']
    #allocation10 [shape = 'u8[122880]{0}', space=vmem, size = 0x1e000, scoped, tag = 'input window, operand 11, single buffered']
    #allocation11 [shape = 'u8[8192]{0}', space=vmem, size = 0x2000, scoped, tag = 'output window, operand 0, single buffered']
    %18 = vsyncpa [#allocation3], 0
    %19 = vsyncpa [#allocation6], 0
    %20 = vsyncpa [#allocation9], 0
    %21 = vsyncpa [#allocation4], 0
    // Predicated region
    $region2: #{transformer_block.1} parent=1 // pred_check
      _
    $region3: #{transformer_block.1} parent=1 // pred_check_branch
      %23 = sbr.rel (0) target = $region5
    $region4: #{transformer_block.1} parent=1 // pred_region
      %s25 = ssub.s32 256, 256
      %26 = vsyncadd [#allocation3], %s25
      %s27 = sshll.u32 [#allocation2], 4
      %s28 = int_to_ptr.vmem [resolvable:$true] %s27
      %33 = dma.hbm_to_vmem [thread:$0]  %s0, 256, %s28, [#allocation3], 128, 128, 8
    $region5: #{transformer_block.1} parent=1 // pred_fallthru
      _
    // Predicated region
    $region6: #{transformer_block.1} parent=1 // pred_check
      _
    $region7: #{transformer_block.1} parent=1 // pred_check_branch
      %35 = sbr.rel (0) target = $region9
    $region8: #{transformer_block.1} parent=1 // pred_region
      _
    $region9: #{transformer_block.1} parent=1 // pred_fallthru
      _
    // Predicated region
    $region10: #{transformer_block.1} parent=1 // pred_check
      _
    $region11: #{transformer_block.1} parent=1 // pred_check_branch
      %37 = sbr.rel (0) target = $region13
    $region12: #{transformer_block.1} parent=1 // pred_region
      _
    $region13: #{transformer_block.1} parent=1 // pred_fallthru
      _
    // Predicated region
    $region14: #{transformer_block.1} parent=1 // pred_check
      _
    $region15: #{transformer_block.1} parent=1 // pred_check_branch
      %39 = sbr.rel (0) target = $region17
    $region16: #{transformer_block.1} parent=1 // pred_region
      _
    $region17: #{transformer_block.1} parent=1 // pred_fallthru
      _
    // Predicated region
    $region18: #{transformer_block.1} parent=1 // pred_check
      _
    $region19: #{transformer_block.1} parent=1 // pred_check_branch
      %41 = sbr.rel (0) target = $region21
    $region20: #{transformer_block.1} parent=1 // pred_region
      %s43 = ssub.s32 2880, 2880
      %44 = vsyncadd [#allocation6], %s43
      %s45 = sshll.u32 [#allocation5], 4
      %s46 = int_to_ptr.vmem [resolvable:$true] %s45
      %51 = dma.hbm_to_vmem [thread:$0]  %s4, 2880, %s46, [#allocation6], 192, 192, 12
    $region21: #{transformer_block.1} parent=1 // pred_fallthru
      _
    // Predicated region
    $region22: #{transformer_block.1} parent=1 // pred_check
      _
    $region23: #{transformer_block.1} parent=1 // pred_check_branch
      %53 = sbr.rel (0) target = $region25
    $region24: #{transformer_block.1} parent=1 // pred_region
      %s55 = ssub.s32 960, 960
      %56 = vsyncadd [#allocation6], %s55
      %s57 = sshll.u32 [#allocation7], 4
      %s58 = int_to_ptr.vmem [resolvable:$true] %s57
      %63 = dma.hbm_to_vmem [thread:$0]  %s5, 960, %s58, [#allocation6], 64, 64, 4
    $region25: #{transformer_block.1} parent=1 // pred_fallthru
      _
    // Predicated region
    $region26: #{transformer_block.1} parent=1 // pred_check
      _
    $region27: #{transformer_block.1} parent=1 // pred_check_branch
      %65 = sbr.rel (0) target = $region29
    $region28: #{transformer_block.1} parent=1 // pred_region
      _
    $region29: #{transformer_block.1} parent=1 // pred_fallthru
      _
    // Predicated region
    $region30: #{transformer_block.1} parent=1 // pred_check
      _
    $region31: #{transformer_block.1} parent=1 // pred_check_branch
      %67 = sbr.rel (0) target = $region33
    $region32: #{transformer_block.1} parent=1 // pred_region
      _
    $region33: #{transformer_block.1} parent=1 // pred_fallthru
      _
    // Predicated region
    $region34: #{transformer_block.1} parent=1 // pred_check
      _
    $region35: #{transformer_block.1} parent=1 // pred_check_branch
      %69 = sbr.rel (0) target = $region37
    $region36: #{transformer_block.1} parent=1 // pred_region
      _
    $region37: #{transformer_block.1} parent=1 // pred_fallthru
      _
    // Predicated region
    $region38: #{transformer_block.1} parent=1 // pred_check
      _
    $region39: #{transformer_block.1} parent=1 // pred_check_branch
      %71 = sbr.rel (0) target = $region41
    $region40: #{transformer_block.1} parent=1 // pred_region
      %s73 = ssub.s32 3840, 3840
      %74 = vsyncadd [#allocation9], %s73
      %s75 = sshll.u32 [#allocation8], 4
      %s76 = int_to_ptr.vmem [resolvable:$true] %s75
      %81 = dma.hbm_to_vmem [thread:$0]  %s9, 3840, %s76, [#allocation9], 256, 256, 16
    $region41: #{transformer_block.1} parent=1 // pred_fallthru
      _
    // Predicated region
    $region42: #{transformer_block.1} parent=1 // pred_check
      _
    $region43: #{transformer_block.1} parent=1 // pred_check_branch
      %83 = sbr.rel (0) target = $region45
    $region44: #{transformer_block.1} parent=1 // pred_region
      _
    $region45: #{transformer_block.1} parent=1 // pred_fallthru
      _
    // Predicated region
    $region46: #{transformer_block.1} parent=1 // pred_check
      _
    $region47: #{transformer_block.1} parent=1 // pred_check_branch
      %85 = sbr.rel (0) target = $region49
    $region48: #{transformer_block.1} parent=1 // pred_region
      %s87 = ssub.s32 3840, 3840
      %88 = vsyncadd [#allocation9], %s87
      %s89 = sshll.u32 [#allocation10], 4
      %s90 = int_to_ptr.vmem [resolvable:$true] %s89
      %95 = dma.hbm_to_vmem [thread:$0]  %s11, 3840, %s90, [#allocation9], 64, 64, 4
    $region49: #{transformer_block.1} parent=1 // pred_fallthru
      _
    // Predicated region
    $region50: #{transformer_block.1} parent=1 // pred_check
      _
    $region51: #{transformer_block.1} parent=1 // pred_check_branch
      %97 = sbr.rel (0) target = $region53
    $region52: #{transformer_block.1} parent=1 // pred_region
      _
    $region53: #{transformer_block.1} parent=1 // pred_fallthru
      _
    // Predicated region
    $region54: #{transformer_block.1} parent=1 // pred_check
      _
    $region55: #{transformer_block.1} parent=1 // pred_check_branch
      %99 = sbr.rel (0) target = $region57
    $region56: #{transformer_block.1} parent=1 // pred_region
      %100 = dma.done [#allocation3], 256
    $region57: #{transformer_block.1} parent=1 // pred_fallthru
      _
    // Predicated region
    $region58: #{transformer_block.1} parent=1 // pred_check
      _
    $region59: #{transformer_block.1} parent=1 // pred_check_branch
      %102 = sbr.rel (0) target = $region61
    $region60: #{transformer_block.1} parent=1 // pred_region
      %103 = dma.done [#allocation6], 2880
    $region61: #{transformer_block.1} parent=1 // pred_fallthru
      _
    // Predicated region
    $region62: #{transformer_block.1} parent=1 // pred_check
      _
    $region63: #{transformer_block.1} parent=1 // pred_check_branch
      %105 = sbr.rel (0) target = $region65
    $region64: #{transformer_block.1} parent=1 // pred_region
      %106 = dma.done [#allocation6], 960
    $region65: #{transformer_block.1} parent=1 // pred_fallthru
      _
    // Predicated region
    $region66: #{transformer_block.1} parent=1 // pred_check
      _
    $region67: #{transformer_block.1} parent=1 // pred_check_branch
      %108 = sbr.rel (0) target = $region69
    $region68: #{transformer_block.1} parent=1 // pred_region
      %109 = dma.done [#allocation9], 3840
    $region69: #{transformer_block.1} parent=1 // pred_fallthru
      _
    // Predicated region
    $region70: #{transformer_block.1} parent=1 // pred_check
      _
    $region71: #{transformer_block.1} parent=1 // pred_check_branch
      %111 = sbr.rel (0) target = $region73
    $region72: #{transformer_block.1} parent=1 // pred_region
      %112 = dma.done [#allocation9], 3840
    $region73: #{transformer_block.1} parent=1 // pred_fallthru
      _
    %v114 = vld [vmem:[#allocation2] sm:$0xff]
    %v115 = vld [vmem:[#allocation2 + $0x8] sm:$0xff]
    %v116 = vld [vmem:[%s2] sm:$0x1]
    %v117 = vld [vmem:[%s3] sm:$0x1]
    %vm118 = vcmask 982016
    %v119 = vsel %vm118, %v114, 0.0
    %120 = vadd.xlane.f32.xlu0 %v119
    %v121 = vpop.xlane.xlu0 %120
    %v122 = vsel %vm118, %v115, 0.0
    %123 = vadd.xlane.f32.xlu0 %v122
    %v124 = vpop.xlane.xlu0 %123
    %v125 = vrcp.pop 120.0
    %v126 = vmul.f32 %v121, %v125
    %v127 = vmul.f32 %v124, %v125
    %v128 = vsub.f32 %v114, %v126
    %v129 = vsub.f32 %v115, %v127
    %v130 = vmul.f32 %v128, %v128
    %v131 = vmul.f32 %v129, %v129
    %v132 = vsel %vm118, %v130, 0.0
    %133 = vadd.xlane.f32.xlu0 %v132
    %v134 = vpop.xlane.xlu0 %133
    %v135 = vsel %vm118, %v131, 0.0
    %136 = vadd.xlane.f32.xlu0 %v135
    %v137 = vpop.xlane.xlu0 %136
    %v138 = vmul.f32 %v134, %v125
    %v139 = vmul.f32 %v137, %v125
    %v140 = vadd.f32 %v138, 1e-05
    %v141 = vadd.f32 %v139, 1e-05
    %v142 = vrsqrt.pop %v140
    %v143 = vrsqrt.pop %v141
    %v144 = vmul.f32 %v128, %v142
    %v145 = vmul.f32 %v129, %v143
    %v147 = vlaneseq
    %v148 = vshrl.u32 %v147, 7
    %v149 = vsub.s32 0, %v148
    %v150 = vrot.slane %v116, %v149
    %v152 = vmul.f32 %v144, %v150
    %v153 = vmul.f32 %v145, %v150
    %v155 = vlaneseq
    %v156 = vshrl.u32 %v155, 7
    %v157 = vsub.s32 0, %v156
    %v158 = vrot.slane %v117, %v157
    %v160 = vadd.f32 %v152, %v158
    %v161 = vadd.f32 %v153, %v158
    %v162 = vpack.c.bf16 %v161, %v160
    %v163 = vld [vmem:[#allocation5] sm:$0xff]
    %v164 = vld [vmem:[#allocation5 + $0x8] sm:$0xf]
    %v165 = vld [vmem:[#allocation5 + $0xc] sm:$0xff]
    %v166 = vld [vmem:[#allocation5 + $0x14] sm:$0xf]
    %v167 = vld [vmem:[#allocation5 + $0x18] sm:$0xff]
    %v168 = vld [vmem:[#allocation5 + $0x20] sm:$0xf]
    %v169 = vld [vmem:[#allocation5 + $0x24] sm:$0xff]
    %v170 = vld [vmem:[#allocation5 + $0x2c] sm:$0xf]
    %v171 = vld [vmem:[#allocation5 + $0x30] sm:$0xff]
    %v172 = vld [vmem:[#allocation5 + $0x38] sm:$0xf]
    %v173 = vld [vmem:[#allocation5 + $0x3c] sm:$0xff]
    %v174 = vld [vmem:[#allocation5 + $0x44] sm:$0xf]
    %v175 = vld [vmem:[#allocation5 + $0x48] sm:$0xff]
    %v176 = vld [vmem:[#allocation5 + $0x50] sm:$0xf]
    %v177 = vld [vmem:[#allocation5 + $0x54] sm:$0xff]
    %v178 = vld [vmem:[#allocation5 + $0x5c] sm:$0xf]
    %v179 = vld [vmem:[#allocation5 + $0x60] sm:$0xff]
    %v180 = vld [vmem:[#allocation5 + $0x68] sm:$0xf]
    %v181 = vld [vmem:[#allocation5 + $0x6c] sm:$0xff]
    %v182 = vld [vmem:[#allocation5 + $0x74] sm:$0xf]
    %v183 = vld [vmem:[#allocation5 + $0x78] sm:$0xff]
    %v184 = vld [vmem:[#allocation5 + $0x80] sm:$0xf]
    %v185 = vld [vmem:[#allocation5 + $0x84] sm:$0xff]
    %v186 = vld [vmem:[#allocation5 + $0x8c] sm:$0xf]
    %v187 = vld [vmem:[#allocation5 + $0x90] sm:$0xff]
    %v188 = vld [vmem:[#allocation5 + $0x98] sm:$0xf]
    %v189 = vld [vmem:[#allocation5 + $0x9c] sm:$0xff]
    %v190 = vld [vmem:[#allocation5 + $0xa4] sm:$0xf]
    %v191 = vld [vmem:[#allocation5 + $0xa8] sm:$0xff]
    %v192 = vld [vmem:[#allocation5 + $0xb0] sm:$0xf]
    %v223 = vunpack.c.l.b16 %v163
    %v224 = vunpack.c.h.b16 %v163
    %v225 = vunpack.c.l.b16 %v164
    %v226 = vunpack.c.l.b16 %v165
    %v227 = vunpack.c.h.b16 %v165
    %v228 = vunpack.c.l.b16 %v166
    %v229 = vunpack.c.l.b16 %v167
    %v230 = vunpack.c.h.b16 %v167
    %v231 = vunpack.c.l.b16 %v168
    %v232 = vunpack.c.l.b16 %v169
    %v233 = vunpack.c.h.b16 %v169
    %v234 = vunpack.c.l.b16 %v170
    %v235 = vunpack.c.l.b16 %v171
    %v236 = vunpack.c.h.b16 %v171
    %v237 = vunpack.c.l.b16 %v172
    %v238 = vunpack.c.l.b16 %v173
    %v239 = vunpack.c.h.b16 %v173
    %v240 = vunpack.c.l.b16 %v174
    %v241 = vunpack.c.l.b16 %v175
    %v242 = vunpack.c.h.b16 %v175
    %v243 = vunpack.c.l.b16 %v176
    %v244 = vunpack.c.l.b16 %v177
    %v245 = vunpack.c.h.b16 %v177
    %v246 = vunpack.c.l.b16 %v178
    %v247 = vunpack.c.l.b16 %v179
    %v248 = vunpack.c.h.b16 %v179
    %v249 = vunpack.c.l.b16 %v180
    %v250 = vunpack.c.l.b16 %v181
    %v251 = vunpack.c.h.b16 %v181
    %v252 = vunpack.c.l.b16 %v182
    %v253 = vunpack.c.l.b16 %v183
    %v254 = vunpack.c.h.b16 %v183
    %v255 = vunpack.c.l.b16 %v184
    %v256 = vunpack.c.l.b16 %v185
    %v257 = vunpack.c.h.b16 %v185
    %v258 = vunpack.c.l.b16 %v186
    %v259 = vunpack.c.l.b16 %v187
    %v260 = vunpack.c.h.b16 %v187
    %v261 = vunpack.c.l.b16 %v188
    %v262 = vunpack.c.l.b16 %v189
    %v263 = vunpack.c.h.b16 %v189
    %v264 = vunpack.c.l.b16 %v190
    %v265 = vunpack.c.l.b16 %v191
    %v266 = vunpack.c.h.b16 %v191
    %v267 = vunpack.c.l.b16 %v192
    %v268 = vpack.c.b16 %v226, %v223
    %v269 = vpack.c.b16 %v227, %v224
    %v270 = vpack.c.b16 %v228, %v225
    %v271 = vpack.c.b16 %v232, %v229
    %v272 = vpack.c.b16 %v233, %v230
    %v273 = vpack.c.b16 %v234, %v231
    %v274 = vpack.c.b16 %v238, %v235
    %v275 = vpack.c.b16 %v239, %v236
    %v276 = vpack.c.b16 %v240, %v237
    %v277 = vpack.c.b16 %v244, %v241
    %v278 = vpack.c.b16 %v245, %v242
    %v279 = vpack.c.b16 %v246, %v243
    %v280 = vpack.c.b16 %v250, %v247
    %v281 = vpack.c.b16 %v251, %v248
    %v282 = vpack.c.b16 %v252, %v249
    %v283 = vpack.c.b16 %v256, %v253
    %v284 = vpack.c.b16 %v257, %v254
    %v285 = vpack.c.b16 %v258, %v255
    %v286 = vpack.c.b16 %v262, %v259
    %v287 = vpack.c.b16 %v263, %v260
    %v288 = vpack.c.b16 %v264, %v261
    %v289 = vpack.c.b16 %v265, %v265
    %v290 = vpack.c.b16 %v266, %v266
    %v291 = vpack.c.b16 %v267, %v267
    %v314 = vsel %vm118, %v162, 0
    %vm316 = vcmask 1043456
    %v318 = vsel %vm316, %v289, 0
    %v321 = vsel %vm316, %v290, 0
    %v324 = vsel %vm316, %v291, 0
    %326 = vmatprep.subr.bf16.mxu0 %v321
    %327 = vmatpush1.bf16.msra.mxu0 %v318
    %328 = vmatprep.subr.bf16.mxu0 %v287
    %329 = vmatpush1.bf16.msra.mxu0 %v286
    %330 = vmatprep.subr.bf16.mxu0 %v284
    %331 = vmatpush1.bf16.msra.mxu0 %v283
    %332 = vmatprep.subr.bf16.mxu0 %v281
    %333 = vmatpush1.bf16.msra.mxu0 %v280
    %334 = vmatprep.subr.bf16.mxu0 %v278
    %335 = vmatpush1.bf16.msra.mxu0 %v277
    %336 = vmatprep.subr.bf16.mxu0 %v275
    %337 = vmatpush1.bf16.msra.mxu0 %v274
    %338 = vmatprep.subr.bf16.mxu0 %v272
    %339 = vmatpush1.bf16.msra.mxu0 %v271
    %340 = vmatprep.subr.bf16.mxu0 %v269
    %341 = vmatpush1.bf16.msra.mxu0 %v268
    %342 = vmatprep.subr.bf16.mxu0 0
    %343 = vmatpush2.bf16.msra.mxu0 0
    %344 = vmatprep.subr.bf16.mxu0 0
    %345 = vmatpush2.bf16.msra.mxu0 0
    %346 = vmatprep.subr.bf16.mxu0 0
    %347 = vmatpush2.bf16.msra.mxu0 0
    %348 = vmatprep.subr.bf16.mxu0 0
    %349 = vmatpush2.bf16.msra.mxu0 0
    %350 = vmatprep.subr.bf16.mxu0 0
    %351 = vmatpush2.bf16.msra.mxu0 0
    %352 = vmatprep.subr.bf16.mxu0 0
    %353 = vmatpush2.bf16.msra.mxu0 0
    %354 = vmatprep.subr.bf16.mxu0 0
    %355 = vmatpush2.bf16.msra.mxu0 0
    %356 = vmatprep.subr.bf16.mxu0 0
    %357 = vmatpush2.bf16.msra.mxu0 0
    %358 = vmatprep.mubr.bf16.mxu0 0
    %359 = vmatmul.mubr.bf16.gmra.mxu0 %v314
    %v360 = vpop.f32.mrf.mxu0
    %v361 = vadd.f32 0.0, %v360
    %v362 = vpop.f32.mrf.mxu0
    %v363 = vadd.f32 0.0, %v362
    %v364 = vpop.f32.mrf.mxu0
    %v365 = vadd.f32 0.0, %v364
    %v366 = vpop.f32.mrf.mxu0
    %v367 = vadd.f32 0.0, %v366
    %368 = vdwg.mxu0
    %369 = vmatprep.subr.bf16.mxu0 0
    %370 = vmatpush1.bf16.msra.mxu0 %v324
    %371 = vmatprep.subr.bf16.mxu0 0
    %372 = vmatpush1.bf16.msra.mxu0 %v288
    %373 = vmatprep.subr.bf16.mxu0 0
    %374 = vmatpush1.bf16.msra.mxu0 %v285
    %375 = vmatprep.subr.bf16.mxu0 0
    %376 = vmatpush1.bf16.msra.mxu0 %v282
    %377 = vmatprep.subr.bf16.mxu0 0
    %378 = vmatpush1.bf16.msra.mxu0 %v279
    %379 = vmatprep.subr.bf16.mxu0 0
    %380 = vmatpush1.bf16.msra.mxu0 %v276
    %381 = vmatprep.subr.bf16.mxu0 0
    %382 = vmatpush1.bf16.msra.mxu0 %v273
    %383 = vmatprep.subr.bf16.mxu0 0
    %384 = vmatpush1.bf16.msra.mxu0 %v270
    %385 = vmatprep.subr.bf16.mxu0 0
    %386 = vmatpush2.bf16.msra.mxu0 0
    %387 = vmatprep.subr.bf16.mxu0 0
    %388 = vmatpush2.bf16.msra.mxu0 0
    %389 = vmatprep.subr.bf16.mxu0 0
    %390 = vmatpush2.bf16.msra.mxu0 0
    %391 = vmatprep.subr.bf16.mxu0 0
    %392 = vmatpush2.bf16.msra.mxu0 0
    %393 = vmatprep.subr.bf16.mxu0 0
    %394 = vmatpush2.bf16.msra.mxu0 0
    %395 = vmatprep.subr.bf16.mxu0 0
    %396 = vmatpush2.bf16.msra.mxu0 0
    %397 = vmatprep.subr.bf16.mxu0 0
    %398 = vmatpush2.bf16.msra.mxu0 0
    %399 = vmatprep.subr.bf16.mxu0 0
    %400 = vmatpush2.bf16.msra.mxu0 0
    %401 = vmatprep.mubr.bf16.mxu0 0
    %402 = vmatmul.mubr.bf16.gmra.mxu0 %v314
    %v403 = vpop.f32.mrf.mxu0
    %v404 = vadd.f32 0.0, %v403
    %v405 = vpop.f32.mrf.mxu0
    %v406 = vpop.f32.mrf.mxu0
    %v407 = vadd.f32 0.0, %v406
    %v408 = vpop.f32.mrf.mxu0
    %409 = vdwg.mxu0
    %v410 = vpack.c.bf16 %v365, %v361
    %v411 = vpack.c.bf16 %v367, %v363
    %v412 = vpack.c.bf16 %v407, %v404
    %v413 = vld [vmem:[%s1] sm:$0xff]
    %v415 = vunpack.c.l.b16 %v410
    %v416 = vunpack.c.h.b16 %v410
    %v417 = vpack.c.b16 %v415, %v415
    %v418 = vpack.c.b16 %v416, %v416
    %v420 = vunpack.c.l.b16 %v411
    %v421 = vunpack.c.h.b16 %v411
    %v423 = vunpack.c.l.b16 %v412
    %v424 = vunpack.c.h.b16 %v412
    %v425 = vpack.c.b16 %v420, %v420
    %426 = vrot.lane.b32.xlu0 %v417, 8
    %v427 = vpop.permute.xlu0 %426
    %428 = vrot.lane.b32.xlu0 %v425, 8
    %v429 = vpop.permute.xlu0 %428
    %vm430 = vcmask 64512
    %v431 = vsel %vm430, %v427, %v429
    %vm432 = vcmask 162816
    %v434 = vsel %vm432, %v417, 0
    %v437 = vsel %vm432, %v431, 0
    %439 = vmatprep.subr.bf16.mxu0 0
    %440 = vmatpush1.bf16.xpose.msra.mxu0 0
    %441 = vmatprep.subr.bf16.mxu0 0
    %442 = vmatpush1.bf16.xpose.msra.mxu0 0
    %443 = vmatprep.subr.bf16.mxu0 0
    %444 = vmatpush1.bf16.xpose.msra.mxu0 0
    %445 = vmatprep.subr.bf16.mxu0 0
    %446 = vmatpush1.bf16.xpose.msra.mxu0 0
    %447 = vmatprep.subr.bf16.mxu0 0
    %448 = vmatpush1.bf16.xpose.msra.mxu0 0
    %449 = vmatprep.subr.bf16.mxu0 0
    %450 = vmatpush1.bf16.xpose.msra.mxu0 0
    %451 = vmatprep.subr.bf16.mxu0 0
    %452 = vmatpush1.bf16.xpose.msra.mxu0 0
    %453 = vmatprep.subr.bf16.mxu0 0
    %454 = vmatpush1.bf16.xpose.msra.mxu0 %v437
    %455 = vmatprep.subr.bf16.mxu0 0
    %456 = vmatpush2.bf16.xpose.msra.mxu0 0
    %457 = vmatprep.subr.bf16.mxu0 0
    %458 = vmatpush2.bf16.xpose.msra.mxu0 0
    %459 = vmatprep.subr.bf16.mxu0 0
    %460 = vmatpush2.bf16.xpose.msra.mxu0 0
    %461 = vmatprep.subr.bf16.mxu0 0
    %462 = vmatpush2.bf16.xpose.msra.mxu0 0
    %463 = vmatprep.subr.bf16.mxu0 0
    %464 = vmatpush2.bf16.xpose.msra.mxu0 0
    %465 = vmatprep.subr.bf16.mxu0 0
    %466 = vmatpush2.bf16.xpose.msra.mxu0 0
    %467 = vmatprep.subr.bf16.mxu0 0
    %468 = vmatpush2.bf16.xpose.msra.mxu0 0
    %469 = vmatprep.subr.bf16.mxu0 0
    %470 = vmatpush2.bf16.xpose.msra.mxu0 0
    %471 = vmatprep.mubr.bf16.mxu0 0
    %472 = vmatmul.mubr.bf16.gmra.mxu0 %v434
    %v473 = vpop.f32.mrf.mxu0
    %v474 = vadd.f32 0.0, %v473
    %v475 = vpop.f32.mrf.mxu0
    %v476 = vpop.f32.mrf.mxu0
    %v477 = vpop.f32.mrf.mxu0
    %478 = vdwg.mxu0
    %v479 = vpack.c.b16 %v421, %v421
    %480 = vrot.lane.b32.xlu0 %v418, 8
    %v481 = vpop.permute.xlu0 %480
    %482 = vrot.lane.b32.xlu0 %v479, 8
    %v483 = vpop.permute.xlu0 %482
    %v484 = vsel %vm430, %v481, %v483
    %v486 = vsel %vm432, %v418, 0
    %v489 = vsel %vm432, %v484, 0
    %491 = vmatprep.subr.bf16.mxu0 0
    %492 = vmatpush1.bf16.xpose.msra.mxu0 0
    %493 = vmatprep.subr.bf16.mxu0 0
    %494 = vmatpush1.bf16.xpose.msra.mxu0 0
    %495 = vmatprep.subr.bf16.mxu0 0
    %496 = vmatpush1.bf16.xpose.msra.mxu0 0
    %497 = vmatprep.subr.bf16.mxu0 0
    %498 = vmatpush1.bf16.xpose.msra.mxu0 0
    %499 = vmatprep.subr.bf16.mxu0 0
    %500 = vmatpush1.bf16.xpose.msra.mxu0 0
    %501 = vmatprep.subr.bf16.mxu0 0
    %502 = vmatpush1.bf16.xpose.msra.mxu0 0
    %503 = vmatprep.subr.bf16.mxu0 0
    %504 = vmatpush1.bf16.xpose.msra.mxu0 0
    %505 = vmatprep.subr.bf16.mxu0 0
    %506 = vmatpush1.bf16.xpose.msra.mxu0 %v489
    %507 = vmatprep.subr.bf16.mxu0 0
    %508 = vmatpush2.bf16.xpose.msra.mxu0 0
    %509 = vmatprep.subr.bf16.mxu0 0
    %510 = vmatpush2.bf16.xpose.msra.mxu0 0
    %511 = vmatprep.subr.bf16.mxu0 0
    %512 = vmatpush2.bf16.xpose.msra.mxu0 0
    %513 = vmatprep.subr.bf16.mxu0 0
    %514 = vmatpush2.bf16.xpose.msra.mxu0 0
    %515 = vmatprep.subr.bf16.mxu0 0
    %516 = vmatpush2.bf16.xpose.msra.mxu0 0
    %517 = vmatprep.subr.bf16.mxu0 0
    %518 = vmatpush2.bf16.xpose.msra.mxu0 0
    %519 = vmatprep.subr.bf16.mxu0 0
    %520 = vmatpush2.bf16.xpose.msra.mxu0 0
    %521 = vmatprep.subr.bf16.mxu0 0
    %522 = vmatpush2.bf16.xpose.msra.mxu0 0
    %523 = vmatprep.mubr.bf16.mxu0 0
    %524 = vmatmul.mubr.bf16.gmra.mxu0 %v486
    %v525 = vpop.f32.mrf.mxu0
    %v526 = vadd.f32 0.0, %v525
    %v527 = vpop.f32.mrf.mxu0
    %v528 = vpop.f32.mrf.mxu0
    %v529 = vpop.f32.mrf.mxu0
    %530 = vdwg.mxu0
    %v531 = vmul.f32 %v474, 0.09128709
    %v532 = vmul.f32 %v526, 0.09128709
    %v533 = vadd.f32 %v531, %v413
    %v534 = vadd.f32 %v532, %v413
    %vm535 = vcmask 64512
    %v536 = vsel %vm535, %v533, -inf
    %537 = vmax.xlane.f32.xlu0 %v536
    %v538 = vpop.xlane.xlu0 %537
    %v539 = vsel %vm535, %v534, -inf
    %540 = vmax.xlane.f32.xlu0 %v539
    %v541 = vpop.xlane.xlu0 %540
    %v542 = vsub.f32 %v533, %v538
    %v543 = vsub.f32 %v534, %v541
    %v544 = vmul.f32 %v542, 1.442695
    %v545 = vpow.pop %v544
    %v546 = vmul.f32 %v543, 1.442695
    %v547 = vpow.pop %v546
    %v548 = vsel %vm535, %v545, 0.0
    %549 = vadd.xlane.f32.xlu0 %v548
    %v550 = vpop.xlane.xlu0 %549
    %v551 = vsel %vm535, %v547, 0.0
    %552 = vadd.xlane.f32.xlu0 %v551
    %v553 = vpop.xlane.xlu0 %552
    %v554 = vrcp.pop %v550
    %v555 = vrcp.pop %v553
    %v556 = vmul.f32 %v545, %v554
    %v557 = vmul.f32 %v547, %v555
    %v558 = vpack.c.bf16 %v556, %v556
    %v559 = vpack.c.bf16 %v557, %v557
    %v560 = vpack.c.b16 %v423, %v423
    %561 = vrot.lane.b32.xlu0 %v425, 16
    %v562 = vpop.permute.xlu0 %561
    %563 = vrot.lane.b32.xlu0 %v560, 16
    %v564 = vpop.permute.xlu0 %563
    %vm565 = vcmask 130048
    %v566 = vsel %vm565, %v562, %v564
    %v568 = vsel %vm535, %v558, 0
    %v571 = vsel %vm316, %v566, 0
    %573 = vmatprep.subr.bf16.mxu0 0
    %574 = vmatpush1.bf16.msra.mxu0 0
    %575 = vmatprep.subr.bf16.mxu0 0
    %576 = vmatpush1.bf16.msra.mxu0 0
    %577 = vmatprep.subr.bf16.mxu0 0
    %578 = vmatpush1.bf16.msra.mxu0 0
    %579 = vmatprep.subr.bf16.mxu0 0
    %580 = vmatpush1.bf16.msra.mxu0 0
    %581 = vmatprep.subr.bf16.mxu0 0
    %582 = vmatpush1.bf16.msra.mxu0 0
    %583 = vmatprep.subr.bf16.mxu0 0
    %584 = vmatpush1.bf16.msra.mxu0 0
    %585 = vmatprep.subr.bf16.mxu0 0
    %586 = vmatpush1.bf16.msra.mxu0 0
    %587 = vmatprep.subr.bf16.mxu0 0
    %588 = vmatpush1.bf16.msra.mxu0 %v571
    %589 = vmatprep.subr.bf16.mxu0 0
    %590 = vmatpush2.bf16.msra.mxu0 0
    %591 = vmatprep.subr.bf16.mxu0 0
    %592 = vmatpush2.bf16.msra.mxu0 0
    %593 = vmatprep.subr.bf16.mxu0 0
    %594 = vmatpush2.bf16.msra.mxu0 0
    %595 = vmatprep.subr.bf16.mxu0 0
    %596 = vmatpush2.bf16.msra.mxu0 0
    %597 = vmatprep.subr.bf16.mxu0 0
    %598 = vmatpush2.bf16.msra.mxu0 0
    %599 = vmatprep.subr.bf16.mxu0 0
    %600 = vmatpush2.bf16.msra.mxu0 0
    %601 = vmatprep.subr.bf16.mxu0 0
    %602 = vmatpush2.bf16.msra.mxu0 0
    %603 = vmatprep.subr.bf16.mxu0 0
    %604 = vmatpush2.bf16.msra.mxu0 0
    %605 = vmatprep.mubr.bf16.mxu0 0
    %606 = vmatmul.mubr.bf16.gmra.mxu0 %v568
    %v607 = vpop.f32.mrf.mxu0
    %v608 = vadd.f32 0.0, %v607
    %v609 = vpop.f32.mrf.mxu0
    %v610 = vpop.f32.mrf.mxu0
    %v611 = vpop.f32.mrf.mxu0
    %612 = vdwg.mxu0
    %v613 = vpack.c.b16 %v424, %v424
    %614 = vrot.lane.b32.xlu0 %v479, 16
    %v615 = vpop.permute.xlu0 %614
    %616 = vrot.lane.b32.xlu0 %v613, 16
    %v617 = vpop.permute.xlu0 %616
    %v618 = vsel %vm565, %v615, %v617
    %v620 = vsel %vm535, %v559, 0
    %v623 = vsel %vm316, %v618, 0
    %625 = vmatprep.subr.bf16.mxu0 0
    %626 = vmatpush1.bf16.msra.mxu0 0
    %627 = vmatprep.subr.bf16.mxu0 0
    %628 = vmatpush1.bf16.msra.mxu0 0
    %629 = vmatprep.subr.bf16.mxu0 0
    %630 = vmatpush1.bf16.msra.mxu0 0
    %631 = vmatprep.subr.bf16.mxu0 0
    %632 = vmatpush1.bf16.msra.mxu0 0
    %633 = vmatprep.subr.bf16.mxu0 0
    %634 = vmatpush1.bf16.msra.mxu0 0
    %635 = vmatprep.subr.bf16.mxu0 0
    %636 = vmatpush1.bf16.msra.mxu0 0
    %637 = vmatprep.subr.bf16.mxu0 0
    %638 = vmatpush1.bf16.msra.mxu0 0
    %639 = vmatprep.subr.bf16.mxu0 0
    %640 = vmatpush1.bf16.msra.mxu0 %v623
    %641 = vmatprep.subr.bf16.mxu0 0
    %642 = vmatpush2.bf16.msra.mxu0 0
    %643 = vmatprep.subr.bf16.mxu0 0
    %644 = vmatpush2.bf16.msra.mxu0 0
    %645 = vmatprep.subr.bf16.mxu0 0
    %646 = vmatpush2.bf16.msra.mxu0 0
    %647 = vmatprep.subr.bf16.mxu0 0
    %648 = vmatpush2.bf16.msra.mxu0 0
    %649 = vmatprep.subr.bf16.mxu0 0
    %650 = vmatpush2.bf16.msra.mxu0 0
    %651 = vmatprep.subr.bf16.mxu0 0
    %652 = vmatpush2.bf16.msra.mxu0 0
    %653 = vmatprep.subr.bf16.mxu0 0
    %654 = vmatpush2.bf16.msra.mxu0 0
    %655 = vmatprep.subr.bf16.mxu0 0
    %656 = vmatpush2.bf16.msra.mxu0 0
    %657 = vmatprep.mubr.bf16.mxu0 0
    %658 = vmatmul.mubr.bf16.gmra.mxu0 %v620
    %v659 = vpop.f32.mrf.mxu0
    %v660 = vadd.f32 0.0, %v659
    %v661 = vpop.f32.mrf.mxu0
    %v662 = vpop.f32.mrf.mxu0
    %v663 = vpop.f32.mrf.mxu0
    %664 = vdwg.mxu0
    %665 = vrot.lane.b32.xlu0 %v417, 108
    %v666 = vpop.permute.xlu0 %665
    %667 = vrot.lane.b32.xlu0 %v425, 116
    %v668 = vpop.permute.xlu0 %667
    %v670 = vsel %vm432, %v666, 0
    %v673 = vsel %vm432, %v668, 0
    %675 = vmatprep.subr.bf16.mxu0 0
    %676 = vmatpush1.bf16.xpose.msra.mxu0 0
    %677 = vmatprep.subr.bf16.mxu0 0
    %678 = vmatpush1.bf16.xpose.msra.mxu0 0
    %679 = vmatprep.subr.bf16.mxu0 0
    %680 = vmatpush1.bf16.xpose.msra.mxu0 0
    %681 = vmatprep.subr.bf16.mxu0 0
    %682 = vmatpush1.bf16.xpose.msra.mxu0 0
    %683 = vmatprep.subr.bf16.mxu0 0
    %684 = vmatpush1.bf16.xpose.msra.mxu0 0
    %685 = vmatprep.subr.bf16.mxu0 0
    %686 = vmatpush1.bf16.xpose.msra.mxu0 0
    %687 = vmatprep.subr.bf16.mxu0 0
    %688 = vmatpush1.bf16.xpose.msra.mxu0 0
    %689 = vmatprep.subr.bf16.mxu0 0
    %690 = vmatpush1.bf16.xpose.msra.mxu0 %v673
    %691 = vmatprep.subr.bf16.mxu0 0
    %692 = vmatpush2.bf16.xpose.msra.mxu0 0
    %693 = vmatprep.subr.bf16.mxu0 0
    %694 = vmatpush2.bf16.xpose.msra.mxu0 0
    %695 = vmatprep.subr.bf16.mxu0 0
    %696 = vmatpush2.bf16.xpose.msra.mxu0 0
    %697 = vmatprep.subr.bf16.mxu0 0
    %698 = vmatpush2.bf16.xpose.msra.mxu0 0
    %699 = vmatprep.subr.bf16.mxu0 0
    %700 = vmatpush2.bf16.xpose.msra.mxu0 0
    %701 = vmatprep.subr.bf16.mxu0 0
    %702 = vmatpush2.bf16.xpose.msra.mxu0 0
    %703 = vmatprep.subr.bf16.mxu0 0
    %704 = vmatpush2.bf16.xpose.msra.mxu0 0
    %705 = vmatprep.subr.bf16.mxu0 0
    %706 = vmatpush2.bf16.xpose.msra.mxu0 0
    %707 = vmatprep.mubr.bf16.mxu0 0
    %708 = vmatmul.mubr.bf16.gmra.mxu0 %v670
    %v709 = vpop.f32.mrf.mxu0
    %v710 = vadd.f32 0.0, %v709
    %v711 = vpop.f32.mrf.mxu0
    %v712 = vpop.f32.mrf.mxu0
    %v713 = vpop.f32.mrf.mxu0
    %714 = vdwg.mxu0
    %715 = vrot.lane.b32.xlu0 %v418, 108
    %v716 = vpop.permute.xlu0 %715
    %717 = vrot.lane.b32.xlu0 %v479, 116
    %v718 = vpop.permute.xlu0 %717
    %v720 = vsel %vm432, %v716, 0
    %v723 = vsel %vm432, %v718, 0
    %725 = vmatprep.subr.bf16.mxu0 0
    %726 = vmatpush1.bf16.xpose.msra.mxu0 0
    %727 = vmatprep.subr.bf16.mxu0 0
    %728 = vmatpush1.bf16.xpose.msra.mxu0 0
    %729 = vmatprep.subr.bf16.mxu0 0
    %730 = vmatpush1.bf16.xpose.msra.mxu0 0
    %731 = vmatprep.subr.bf16.mxu0 0
    %732 = vmatpush1.bf16.xpose.msra.mxu0 0
    %733 = vmatprep.subr.bf16.mxu0 0
    %734 = vmatpush1.bf16.xpose.msra.mxu0 0
    %735 = vmatprep.subr.bf16.mxu0 0
    %736 = vmatpush1.bf16.xpose.msra.mxu0 0
    %737 = vmatprep.subr.bf16.mxu0 0
    %738 = vmatpush1.bf16.xpose.msra.mxu0 0
    %739 = vmatprep.subr.bf16.mxu0 0
    %740 = vmatpush1.bf16.xpose.msra.mxu0 %v723
    %741 = vmatprep.subr.bf16.mxu0 0
    %742 = vmatpush2.bf16.xpose.msra.mxu0 0
    %743 = vmatprep.subr.bf16.mxu0 0
    %744 = vmatpush2.bf16.xpose.msra.mxu0 0
    %745 = vmatprep.subr.bf16.mxu0 0
    %746 = vmatpush2.bf16.xpose.msra.mxu0 0
    %747 = vmatprep.subr.bf16.mxu0 0
    %748 = vmatpush2.bf16.xpose.msra.mxu0 0
    %749 = vmatprep.subr.bf16.mxu0 0
    %750 = vmatpush2.bf16.xpose.msra.mxu0 0
    %751 = vmatprep.subr.bf16.mxu0 0
    %752 = vmatpush2.bf16.xpose.msra.mxu0 0
    %753 = vmatprep.subr.bf16.mxu0 0
    %754 = vmatpush2.bf16.xpose.msra.mxu0 0
    %755 = vmatprep.subr.bf16.mxu0 0
    %756 = vmatpush2.bf16.xpose.msra.mxu0 0
    %757 = vmatprep.mubr.bf16.mxu0 0
    %758 = vmatmul.mubr.bf16.gmra.mxu0 %v720
    %v759 = vpop.f32.mrf.mxu0
    %v760 = vadd.f32 0.0, %v759
    %v761 = vpop.f32.mrf.mxu0
    %v762 = vpop.f32.mrf.mxu0
    %v763 = vpop.f32.mrf.mxu0
    %764 = vdwg.mxu0
    %v765 = vmul.f32 %v710, 0.09128709
    %v766 = vmul.f32 %v760, 0.09128709
    %v767 = vadd.f32 %v765, %v413
    %v768 = vadd.f32 %v766, %v413
    %v769 = vsel %vm535, %v767, -inf
    %770 = vmax.xlane.f32.xlu0 %v769
    %v771 = vpop.xlane.xlu0 %770
    %v772 = vsel %vm535, %v768, -inf
    %773 = vmax.xlane.f32.xlu0 %v772
    %v774 = vpop.xlane.xlu0 %773
    %v775 = vsub.f32 %v767, %v771
    %v776 = vsub.f32 %v768, %v774
    %v777 = vmul.f32 %v775, 1.442695
    %v778 = vpow.pop %v777
    %v779 = vmul.f32 %v776, 1.442695
    %v780 = vpow.pop %v779
    %v781 = vsel %vm535, %v778, 0.0
    %782 = vadd.xlane.f32.xlu0 %v781
    %v783 = vpop.xlane.xlu0 %782
    %v784 = vsel %vm535, %v780, 0.0
    %785 = vadd.xlane.f32.xlu0 %v784
    %v786 = vpop.xlane.xlu0 %785
    %v787 = vrcp.pop %v783
    %v788 = vrcp.pop %v786
    %v789 = vmul.f32 %v778, %v787
    %v790 = vmul.f32 %v780, %v788
    %v791 = vpack.c.bf16 %v789, %v789
    %v792 = vpack.c.bf16 %v790, %v790
    %793 = vrot.lane.b32.xlu0 %v560, 124
    %v794 = vpop.permute.xlu0 %793
    %v796 = vsel %vm535, %v791, 0
    %v799 = vsel %vm316, %v794, 0
    %801 = vmatprep.subr.bf16.mxu0 0
    %802 = vmatpush1.bf16.msra.mxu0 0
    %803 = vmatprep.subr.bf16.mxu0 0
    %804 = vmatpush1.bf16.msra.mxu0 0
    %805 = vmatprep.subr.bf16.mxu0 0
    %806 = vmatpush1.bf16.msra.mxu0 0
    %807 = vmatprep.subr.bf16.mxu0 0
    %808 = vmatpush1.bf16.msra.mxu0 0
    %809 = vmatprep.subr.bf16.mxu0 0
    %810 = vmatpush1.bf16.msra.mxu0 0
    %811 = vmatprep.subr.bf16.mxu0 0
    %812 = vmatpush1.bf16.msra.mxu0 0
    %813 = vmatprep.subr.bf16.mxu0 0
    %814 = vmatpush1.bf16.msra.mxu0 0
    %815 = vmatprep.subr.bf16.mxu0 0
    %816 = vmatpush1.bf16.msra.mxu0 %v799
    %817 = vmatprep.subr.bf16.mxu0 0
    %818 = vmatpush2.bf16.msra.mxu0 0
    %819 = vmatprep.subr.bf16.mxu0 0
    %820 = vmatpush2.bf16.msra.mxu0 0
    %821 = vmatprep.subr.bf16.mxu0 0
    %822 = vmatpush2.bf16.msra.mxu0 0
    %823 = vmatprep.subr.bf16.mxu0 0
    %824 = vmatpush2.bf16.msra.mxu0 0
    %825 = vmatprep.subr.bf16.mxu0 0
    %826 = vmatpush2.bf16.msra.mxu0 0
    %827 = vmatprep.subr.bf16.mxu0 0
    %828 = vmatpush2.bf16.msra.mxu0 0
    %829 = vmatprep.subr.bf16.mxu0 0
    %830 = vmatpush2.bf16.msra.mxu0 0
    %831 = vmatprep.subr.bf16.mxu0 0
    %832 = vmatpush2.bf16.msra.mxu0 0
    %833 = vmatprep.mubr.bf16.mxu0 0
    %834 = vmatmul.mubr.bf16.gmra.mxu0 %v796
    %v835 = vpop.f32.mrf.mxu0
    %v836 = vadd.f32 0.0, %v835
    %v837 = vpop.f32.mrf.mxu0
    %v838 = vpop.f32.mrf.mxu0
    %v839 = vpop.f32.mrf.mxu0
    %840 = vdwg.mxu0
    %841 = vrot.lane.b32.xlu0 %v613, 124
    %v842 = vpop.permute.xlu0 %841
    %v844 = vsel %vm535, %v792, 0
    %v847 = vsel %vm316, %v842, 0
    %849 = vmatprep.subr.bf16.mxu0 0
    %850 = vmatpush1.bf16.msra.mxu0 0
    %851 = vmatprep.subr.bf16.mxu0 0
    %852 = vmatpush1.bf16.msra.mxu0 0
    %853 = vmatprep.subr.bf16.mxu0 0
    %854 = vmatpush1.bf16.msra.mxu0 0
    %855 = vmatprep.subr.bf16.mxu0 0
    %856 = vmatpush1.bf16.msra.mxu0 0
    %857 = vmatprep.subr.bf16.mxu0 0
    %858 = vmatpush1.bf16.msra.mxu0 0
    %859 = vmatprep.subr.bf16.mxu0 0
    %860 = vmatpush1.bf16.msra.mxu0 0
    %861 = vmatprep.subr.bf16.mxu0 0
    %862 = vmatpush1.bf16.msra.mxu0 0
    %863 = vmatprep.subr.bf16.mxu0 0
    %864 = vmatpush1.bf16.msra.mxu0 %v847
    %865 = vmatprep.subr.bf16.mxu0 0
    %866 = vmatpush2.bf16.msra.mxu0 0
    %867 = vmatprep.subr.bf16.mxu0 0
    %868 = vmatpush2.bf16.msra.mxu0 0
    %869 = vmatprep.subr.bf16.mxu0 0
    %870 = vmatpush2.bf16.msra.mxu0 0
    %871 = vmatprep.subr.bf16.mxu0 0
    %872 = vmatpush2.bf16.msra.mxu0 0
    %873 = vmatprep.subr.bf16.mxu0 0
    %874 = vmatpush2.bf16.msra.mxu0 0
    %875 = vmatprep.subr.bf16.mxu0 0
    %876 = vmatpush2.bf16.msra.mxu0 0
    %877 = vmatprep.subr.bf16.mxu0 0
    %878 = vmatpush2.bf16.msra.mxu0 0
    %879 = vmatprep.subr.bf16.mxu0 0
    %880 = vmatpush2.bf16.msra.mxu0 0
    %881 = vmatprep.mubr.bf16.mxu0 0
    %882 = vmatmul.mubr.bf16.gmra.mxu0 %v844
    %v883 = vpop.f32.mrf.mxu0
    %v884 = vadd.f32 0.0, %v883
    %v885 = vpop.f32.mrf.mxu0
    %v886 = vpop.f32.mrf.mxu0
    %v887 = vpop.f32.mrf.mxu0
    %888 = vdwg.mxu0
    %889 = vrot.lane.b32.xlu0 %v417, 88
    %v890 = vpop.permute.xlu0 %889
    %891 = vrot.lane.b32.xlu0 %v425, 96
    %v892 = vpop.permute.xlu0 %891
    %v894 = vsel %vm432, %v890, 0
    %v897 = vsel %vm432, %v892, 0
    %899 = vmatprep.subr.bf16.mxu0 0
    %900 = vmatpush1.bf16.xpose.msra.mxu0 0
    %901 = vmatprep.subr.bf16.mxu0 0
    %902 = vmatpush1.bf16.xpose.msra.mxu0 0
    %903 = vmatprep.subr.bf16.mxu0 0
    %904 = vmatpush1.bf16.xpose.msra.mxu0 0
    %905 = vmatprep.subr.bf16.mxu0 0
    %906 = vmatpush1.bf16.xpose.msra.mxu0 0
    %907 = vmatprep.subr.bf16.mxu0 0
    %908 = vmatpush1.bf16.xpose.msra.mxu0 0
    %909 = vmatprep.subr.bf16.mxu0 0
    %910 = vmatpush1.bf16.xpose.msra.mxu0 0
    %911 = vmatprep.subr.bf16.mxu0 0
    %912 = vmatpush1.bf16.xpose.msra.mxu0 0
    %913 = vmatprep.subr.bf16.mxu0 0
    %914 = vmatpush1.bf16.xpose.msra.mxu0 %v897
    %915 = vmatprep.subr.bf16.mxu0 0
    %916 = vmatpush2.bf16.xpose.msra.mxu0 0
    %917 = vmatprep.subr.bf16.mxu0 0
    %918 = vmatpush2.bf16.xpose.msra.mxu0 0
    %919 = vmatprep.subr.bf16.mxu0 0
    %920 = vmatpush2.bf16.xpose.msra.mxu0 0
    %921 = vmatprep.subr.bf16.mxu0 0
    %922 = vmatpush2.bf16.xpose.msra.mxu0 0
    %923 = vmatprep.subr.bf16.mxu0 0
    %924 = vmatpush2.bf16.xpose.msra.mxu0 0
    %925 = vmatprep.subr.bf16.mxu0 0
    %926 = vmatpush2.bf16.xpose.msra.mxu0 0
    %927 = vmatprep.subr.bf16.mxu0 0
    %928 = vmatpush2.bf16.xpose.msra.mxu0 0
    %929 = vmatprep.subr.bf16.mxu0 0
    %930 = vmatpush2.bf16.xpose.msra.mxu0 0
    %931 = vmatprep.mubr.bf16.mxu0 0
    %932 = vmatmul.mubr.bf16.gmra.mxu0 %v894
    %v933 = vpop.f32.mrf.mxu0
    %v934 = vadd.f32 0.0, %v933
    %v935 = vpop.f32.mrf.mxu0
    %v936 = vpop.f32.mrf.mxu0
    %v937 = vpop.f32.mrf.mxu0
    %938 = vdwg.mxu0
    %939 = vrot.lane.b32.xlu0 %v418, 88
    %v940 = vpop.permute.xlu0 %939
    %941 = vrot.lane.b32.xlu0 %v479, 96
    %v942 = vpop.permute.xlu0 %941
    %v944 = vsel %vm432, %v940, 0
    %v947 = vsel %vm432, %v942, 0
    %949 = vmatprep.subr.bf16.mxu0 0
    %950 = vmatpush1.bf16.xpose.msra.mxu0 0
    %951 = vmatprep.subr.bf16.mxu0 0
    %952 = vmatpush1.bf16.xpose.msra.mxu0 0
    %953 = vmatprep.subr.bf16.mxu0 0
    %954 = vmatpush1.bf16.xpose.msra.mxu0 0
    %955 = vmatprep.subr.bf16.mxu0 0
    %956 = vmatpush1.bf16.xpose.msra.mxu0 0
    %957 = vmatprep.subr.bf16.mxu0 0
    %958 = vmatpush1.bf16.xpose.msra.mxu0 0
    %959 = vmatprep.subr.bf16.mxu0 0
    %960 = vmatpush1.bf16.xpose.msra.mxu0 0
    %961 = vmatprep.subr.bf16.mxu0 0
    %962 = vmatpush1.bf16.xpose.msra.mxu0 0
    %963 = vmatprep.subr.bf16.mxu0 0
    %964 = vmatpush1.bf16.xpose.msra.mxu0 %v947
    %965 = vmatprep.subr.bf16.mxu0 0
    %966 = vmatpush2.bf16.xpose.msra.mxu0 0
    %967 = vmatprep.subr.bf16.mxu0 0
    %968 = vmatpush2.bf16.xpose.msra.mxu0 0
    %969 = vmatprep.subr.bf16.mxu0 0
    %970 = vmatpush2.bf16.xpose.msra.mxu0 0
    %971 = vmatprep.subr.bf16.mxu0 0
    %972 = vmatpush2.bf16.xpose.msra.mxu0 0
    %973 = vmatprep.subr.bf16.mxu0 0
    %974 = vmatpush2.bf16.xpose.msra.mxu0 0
    %975 = vmatprep.subr.bf16.mxu0 0
    %976 = vmatpush2.bf16.xpose.msra.mxu0 0
    %977 = vmatprep.subr.bf16.mxu0 0
    %978 = vmatpush2.bf16.xpose.msra.mxu0 0
    %979 = vmatprep.subr.bf16.mxu0 0
    %980 = vmatpush2.bf16.xpose.msra.mxu0 0
    %981 = vmatprep.mubr.bf16.mxu0 0
    %982 = vmatmul.mubr.bf16.gmra.mxu0 %v944
    %v983 = vpop.f32.mrf.mxu0
    %v984 = vadd.f32 0.0, %v983
    %v985 = vpop.f32.mrf.mxu0
    %v986 = vpop.f32.mrf.mxu0
    %v987 = vpop.f32.mrf.mxu0
    %988 = vdwg.mxu0
    %v989 = vmul.f32 %v934, 0.09128709
    %v990 = vmul.f32 %v984, 0.09128709
    %v991 = vadd.f32 %v989, %v413
    %v992 = vadd.f32 %v990, %v413
    %v993 = vsel %vm535, %v991, -inf
    %994 = vmax.xlane.f32.xlu0 %v993
    %v995 = vpop.xlane.xlu0 %994
    %v996 = vsel %vm535, %v992, -inf
    %997 = vmax.xlane.f32.xlu0 %v996
    %v998 = vpop.xlane.xlu0 %997
    %v999 = vsub.f32 %v991, %v995
    %v1000 = vsub.f32 %v992, %v998
    %v1001 = vmul.f32 %v999, 1.442695
    %v1002 = vpow.pop %v1001
    %v1003 = vmul.f32 %v1000, 1.442695
    %v1004 = vpow.pop %v1003
    %v1005 = vsel %vm535, %v1002, 0.0
    %1006 = vadd.xlane.f32.xlu0 %v1005
    %v1007 = vpop.xlane.xlu0 %1006
    %v1008 = vsel %vm535, %v1004, 0.0
    %1009 = vadd.xlane.f32.xlu0 %v1008
    %v1010 = vpop.xlane.xlu0 %1009
    %v1011 = vrcp.pop %v1007
    %v1012 = vrcp.pop %v1010
    %v1013 = vmul.f32 %v1002, %v1011
    %v1014 = vmul.f32 %v1004, %v1012
    %v1015 = vpack.c.bf16 %v1013, %v1013
    %v1016 = vpack.c.bf16 %v1014, %v1014
    %1017 = vrot.lane.b32.xlu0 %v560, 104
    %v1018 = vpop.permute.xlu0 %1017
    %v1020 = vsel %vm535, %v1015, 0
    %v1023 = vsel %vm316, %v1018, 0
    %1025 = vmatprep.subr.bf16.mxu0 0
    %1026 = vmatpush1.bf16.msra.mxu0 0
    %1027 = vmatprep.subr.bf16.mxu0 0
    %1028 = vmatpush1.bf16.msra.mxu0 0
    %1029 = vmatprep.subr.bf16.mxu0 0
    %1030 = vmatpush1.bf16.msra.mxu0 0
    %1031 = vmatprep.subr.bf16.mxu0 0
    %1032 = vmatpush1.bf16.msra.mxu0 0
    %1033 = vmatprep.subr.bf16.mxu0 0
    %1034 = vmatpush1.bf16.msra.mxu0 0
    %1035 = vmatprep.subr.bf16.mxu0 0
    %1036 = vmatpush1.bf16.msra.mxu0 0
    %1037 = vmatprep.subr.bf16.mxu0 0
    %1038 = vmatpush1.bf16.msra.mxu0 0
    %1039 = vmatprep.subr.bf16.mxu0 0
    %1040 = vmatpush1.bf16.msra.mxu0 %v1023
    %1041 = vmatprep.subr.bf16.mxu0 0
    %1042 = vmatpush2.bf16.msra.mxu0 0
    %1043 = vmatprep.subr.bf16.mxu0 0
    %1044 = vmatpush2.bf16.msra.mxu0 0
    %1045 = vmatprep.subr.bf16.mxu0 0
    %1046 = vmatpush2.bf16.msra.mxu0 0
    %1047 = vmatprep.subr.bf16.mxu0 0
    %1048 = vmatpush2.bf16.msra.mxu0 0
    %1049 = vmatprep.subr.bf16.mxu0 0
    %1050 = vmatpush2.bf16.msra.mxu0 0
    %1051 = vmatprep.subr.bf16.mxu0 0
    %1052 = vmatpush2.bf16.msra.mxu0 0
    %1053 = vmatprep.subr.bf16.mxu0 0
    %1054 = vmatpush2.bf16.msra.mxu0 0
    %1055 = vmatprep.subr.bf16.mxu0 0
    %1056 = vmatpush2.bf16.msra.mxu0 0
    %1057 = vmatprep.mubr.bf16.mxu0 0
    %1058 = vmatmul.mubr.bf16.gmra.mxu0 %v1020
    %v1059 = vpop.f32.mrf.mxu0
    %v1060 = vadd.f32 0.0, %v1059
    %v1061 = vpop.f32.mrf.mxu0
    %v1062 = vpop.f32.mrf.mxu0
    %v1063 = vpop.f32.mrf.mxu0
    %1064 = vdwg.mxu0
    %1065 = vrot.lane.b32.xlu0 %v613, 104
    %v1066 = vpop.permute.xlu0 %1065
    %v1068 = vsel %vm535, %v1016, 0
    %v1071 = vsel %vm316, %v1066, 0
    %1073 = vmatprep.subr.bf16.mxu0 0
    %1074 = vmatpush1.bf16.msra.mxu0 0
    %1075 = vmatprep.subr.bf16.mxu0 0
    %1076 = vmatpush1.bf16.msra.mxu0 0
    %1077 = vmatprep.subr.bf16.mxu0 0
    %1078 = vmatpush1.bf16.msra.mxu0 0
    %1079 = vmatprep.subr.bf16.mxu0 0
    %1080 = vmatpush1.bf16.msra.mxu0 0
    %1081 = vmatprep.subr.bf16.mxu0 0
    %1082 = vmatpush1.bf16.msra.mxu0 0
    %1083 = vmatprep.subr.bf16.mxu0 0
    %1084 = vmatpush1.bf16.msra.mxu0 0
    %1085 = vmatprep.subr.bf16.mxu0 0
    %1086 = vmatpush1.bf16.msra.mxu0 0
    %1087 = vmatprep.subr.bf16.mxu0 0
    %1088 = vmatpush1.bf16.msra.mxu0 %v1071
    %1089 = vmatprep.subr.bf16.mxu0 0
    %1090 = vmatpush2.bf16.msra.mxu0 0
    %1091 = vmatprep.subr.bf16.mxu0 0
    %1092 = vmatpush2.bf16.msra.mxu0 0
    %1093 = vmatprep.subr.bf16.mxu0 0
    %1094 = vmatpush2.bf16.msra.mxu0 0
    %1095 = vmatprep.subr.bf16.mxu0 0
    %1096 = vmatpush2.bf16.msra.mxu0 0
    %1097 = vmatprep.subr.bf16.mxu0 0
    %1098 = vmatpush2.bf16.msra.mxu0 0
    %1099 = vmatprep.subr.bf16.mxu0 0
    %1100 = vmatpush2.bf16.msra.mxu0 0
    %1101 = vmatprep.subr.bf16.mxu0 0
    %1102 = vmatpush2.bf16.msra.mxu0 0
    %1103 = vmatprep.subr.bf16.mxu0 0
    %1104 = vmatpush2.bf16.msra.mxu0 0
    %1105 = vmatprep.mubr.bf16.mxu0 0
    %1106 = vmatmul.mubr.bf16.gmra.mxu0 %v1068
    %v1107 = vpop.f32.mrf.mxu0
    %v1108 = vadd.f32 0.0, %v1107
    %v1109 = vpop.f32.mrf.mxu0
    %v1110 = vpop.f32.mrf.mxu0
    %v1111 = vpop.f32.mrf.mxu0
    %1112 = vdwg.mxu0
    %1113 = vrot.lane.b32.xlu0 %v417, 68
    %v1114 = vpop.permute.xlu0 %1113
    %1115 = vrot.lane.b32.xlu0 %v425, 76
    %v1116 = vpop.permute.xlu0 %1115
    %v1118 = vsel %vm432, %v1114, 0
    %v1121 = vsel %vm432, %v1116, 0
    %1123 = vmatprep.subr.bf16.mxu0 0
    %1124 = vmatpush1.bf16.xpose.msra.mxu0 0
    %1125 = vmatprep.subr.bf16.mxu0 0
    %1126 = vmatpush1.bf16.xpose.msra.mxu0 0
    %1127 = vmatprep.subr.bf16.mxu0 0
    %1128 = vmatpush1.bf16.xpose.msra.mxu0 0
    %1129 = vmatprep.subr.bf16.mxu0 0
    %1130 = vmatpush1.bf16.xpose.msra.mxu0 0
    %1131 = vmatprep.subr.bf16.mxu0 0
    %1132 = vmatpush1.bf16.xpose.msra.mxu0 0
    %1133 = vmatprep.subr.bf16.mxu0 0
    %1134 = vmatpush1.bf16.xpose.msra.mxu0 0
    %1135 = vmatprep.subr.bf16.mxu0 0
    %1136 = vmatpush1.bf16.xpose.msra.mxu0 0
    %1137 = vmatprep.subr.bf16.mxu0 0
    %1138 = vmatpush1.bf16.xpose.msra.mxu0 %v1121
    %1139 = vmatprep.subr.bf16.mxu0 0
    %1140 = vmatpush2.bf16.xpose.msra.mxu0 0
    %1141 = vmatprep.subr.bf16.mxu0 0
    %1142 = vmatpush2.bf16.xpose.msra.mxu0 0
    %1143 = vmatprep.subr.bf16.mxu0 0
    %1144 = vmatpush2.bf16.xpose.msra.mxu0 0
    %1145 = vmatprep.subr.bf16.mxu0 0
    %1146 = vmatpush2.bf16.xpose.msra.mxu0 0
    %1147 = vmatprep.subr.bf16.mxu0 0
    %1148 = vmatpush2.bf16.xpose.msra.mxu0 0
    %1149 = vmatprep.subr.bf16.mxu0 0
    %1150 = vmatpush2.bf16.xpose.msra.mxu0 0
    %1151 = vmatprep.subr.bf16.mxu0 0
    %1152 = vmatpush2.bf16.xpose.msra.mxu0 0
    %1153 = vmatprep.subr.bf16.mxu0 0
    %1154 = vmatpush2.bf16.xpose.msra.mxu0 0
    %1155 = vmatprep.mubr.bf16.mxu0 0
    %1156 = vmatmul.mubr.bf16.gmra.mxu0 %v1118
    %v1157 = vpop.f32.mrf.mxu0
    %v1158 = vadd.f32 0.0, %v1157
    %v1159 = vpop.f32.mrf.mxu0
    %v1160 = vpop.f32.mrf.mxu0
    %v1161 = vpop.f32.mrf.mxu0
    %1162 = vdwg.mxu0
    %1163 = vrot.lane.b32.xlu0 %v418, 68
    %v1164 = vpop.permute.xlu0 %1163
    %1165 = vrot.lane.b32.xlu0 %v479, 76
    %v1166 = vpop.permute.xlu0 %1165
    %v1168 = vsel %vm432, %v1164, 0
    %v1171 = vsel %vm432, %v1166, 0
    %1173 = vmatprep.subr.bf16.mxu0 0
    %1174 = vmatpush1.bf16.xpose.msra.mxu0 0
    %1175 = vmatprep.subr.bf16.mxu0 0
    %1176 = vmatpush1.bf16.xpose.msra.mxu0 0
    %1177 = vmatprep.subr.bf16.mxu0 0
    %1178 = vmatpush1.bf16.xpose.msra.mxu0 0
    %1179 = vmatprep.subr.bf16.mxu0 0
    %1180 = vmatpush1.bf16.xpose.msra.mxu0 0
    %1181 = vmatprep.subr.bf16.mxu0 0
    %1182 = vmatpush1.bf16.xpose.msra.mxu0 0
    %1183 = vmatprep.subr.bf16.mxu0 0
    %1184 = vmatpush1.bf16.xpose.msra.mxu0 0
    %1185 = vmatprep.subr.bf16.mxu0 0
    %1186 = vmatpush1.bf16.xpose.msra.mxu0 0
    %1187 = vmatprep.subr.bf16.mxu0 0
    %1188 = vmatpush1.bf16.xpose.msra.mxu0 %v1171
    %1189 = vmatprep.subr.bf16.mxu0 0
    %1190 = vmatpush2.bf16.xpose.msra.mxu0 0
    %1191 = vmatprep.subr.bf16.mxu0 0
    %1192 = vmatpush2.bf16.xpose.msra.mxu0 0
    %1193 = vmatprep.subr.bf16.mxu0 0
    %1194 = vmatpush2.bf16.xpose.msra.mxu0 0
    %1195 = vmatprep.subr.bf16.mxu0 0
    %1196 = vmatpush2.bf16.xpose.msra.mxu0 0
    %1197 = vmatprep.subr.bf16.mxu0 0
    %1198 = vmatpush2.bf16.xpose.msra.mxu0 0
    %1199 = vmatprep.subr.bf16.mxu0 0
    %1200 = vmatpush2.bf16.xpose.msra.mxu0 0
    %1201 = vmatprep.subr.bf16.mxu0 0
    %1202 = vmatpush2.bf16.xpose.msra.mxu0 0
    %1203 = vmatprep.subr.bf16.mxu0 0
    %1204 = vmatpush2.bf16.xpose.msra.mxu0 0
    %1205 = vmatprep.mubr.bf16.mxu0 0
    %1206 = vmatmul.mubr.bf16.gmra.mxu0 %v1168
    %v1207 = vpop.f32.mrf.mxu0
    %v1208 = vadd.f32 0.0, %v1207
    %v1209 = vpop.f32.mrf.mxu0
    %v1210 = vpop.f32.mrf.mxu0
    %v1211 = vpop.f32.mrf.mxu0
    %1212 = vdwg.mxu0
    %v1213 = vmul.f32 %v1158, 0.09128709
    %v1214 = vmul.f32 %v1208, 0.09128709
    %v1215 = vadd.f32 %v1213, %v413
    %v1216 = vadd.f32 %v1214, %v413
    %v1217 = vsel %vm535, %v1215, -inf
    %1218 = vmax.xlane.f32.xlu0 %v1217
    %v1219 = vpop.xlane.xlu0 %1218
    %v1220 = vsel %vm535, %v1216, -inf
    %1221 = vmax.xlane.f32.xlu0 %v1220
    %v1222 = vpop.xlane.xlu0 %1221
    %v1223 = vsub.f32 %v1215, %v1219
    %v1224 = vsub.f32 %v1216, %v1222
    %v1225 = vmul.f32 %v1223, 1.442695
    %v1226 = vpow.pop %v1225
    %v1227 = vmul.f32 %v1224, 1.442695
    %v1228 = vpow.pop %v1227
    %v1229 = vsel %vm535, %v1226, 0.0
    %1230 = vadd.xlane.f32.xlu0 %v1229
    %v1231 = vpop.xlane.xlu0 %1230
    %v1232 = vsel %vm535, %v1228, 0.0
    %1233 = vadd.xlane.f32.xlu0 %v1232
    %v1234 = vpop.xlane.xlu0 %1233
    %v1235 = vrcp.pop %v1231
    %v1236 = vrcp.pop %v1234
    %v1237 = vmul.f32 %v1226, %v1235
    %v1238 = vmul.f32 %v1228, %v1236
    %v1239 = vpack.c.bf16 %v1237, %v1237
    %v1240 = vpack.c.bf16 %v1238, %v1238
    %1241 = vrot.lane.b32.xlu0 %v560, 84
    %v1242 = vpop.permute.xlu0 %1241
    %v1244 = vsel %vm535, %v1239, 0
    %v1247 = vsel %vm316, %v1242, 0
    %1249 = vmatprep.subr.bf16.mxu0 0
    %1250 = vmatpush1.bf16.msra.mxu0 0
    %1251 = vmatprep.subr.bf16.mxu0 0
    %1252 = vmatpush1.bf16.msra.mxu0 0
    %1253 = vmatprep.subr.bf16.mxu0 0
    %1254 = vmatpush1.bf16.msra.mxu0 0
    %1255 = vmatprep.subr.bf16.mxu0 0
    %1256 = vmatpush1.bf16.msra.mxu0 0
    %1257 = vmatprep.subr.bf16.mxu0 0
    %1258 = vmatpush1.bf16.msra.mxu0 0
    %1259 = vmatprep.subr.bf16.mxu0 0
    %1260 = vmatpush1.bf16.msra.mxu0 0
    %1261 = vmatprep.subr.bf16.mxu0 0
    %1262 = vmatpush1.bf16.msra.mxu0 0
    %1263 = vmatprep.subr.bf16.mxu0 0
    %1264 = vmatpush1.bf16.msra.mxu0 %v1247
    %1265 = vmatprep.subr.bf16.mxu0 0
    %1266 = vmatpush2.bf16.msra.mxu0 0
    %1267 = vmatprep.subr.bf16.mxu0 0
    %1268 = vmatpush2.bf16.msra.mxu0 0
    %1269 = vmatprep.subr.bf16.mxu0 0
    %1270 = vmatpush2.bf16.msra.mxu0 0
    %1271 = vmatprep.subr.bf16.mxu0 0
    %1272 = vmatpush2.bf16.msra.mxu0 0
    %1273 = vmatprep.subr.bf16.mxu0 0
    %1274 = vmatpush2.bf16.msra.mxu0 0
    %1275 = vmatprep.subr.bf16.mxu0 0
    %1276 = vmatpush2.bf16.msra.mxu0 0
    %1277 = vmatprep.subr.bf16.mxu0 0
    %1278 = vmatpush2.bf16.msra.mxu0 0
    %1279 = vmatprep.subr.bf16.mxu0 0
    %1280 = vmatpush2.bf16.msra.mxu0 0
    %1281 = vmatprep.mubr.bf16.mxu0 0
    %1282 = vmatmul.mubr.bf16.gmra.mxu0 %v1244
    %v1283 = vpop.f32.mrf.mxu0
    %v1284 = vadd.f32 0.0, %v1283
    %v1285 = vpop.f32.mrf.mxu0
    %v1286 = vpop.f32.mrf.mxu0
    %v1287 = vpop.f32.mrf.mxu0
    %1288 = vdwg.mxu0
    %1289 = vrot.lane.b32.xlu0 %v613, 84
    %v1290 = vpop.permute.xlu0 %1289
    %v1292 = vsel %vm535, %v1240, 0
    %v1295 = vsel %vm316, %v1290, 0
    %1297 = vmatprep.subr.bf16.mxu0 0
    %1298 = vmatpush1.bf16.msra.mxu0 0
    %1299 = vmatprep.subr.bf16.mxu0 0
    %1300 = vmatpush1.bf16.msra.mxu0 0
    %1301 = vmatprep.subr.bf16.mxu0 0
    %1302 = vmatpush1.bf16.msra.mxu0 0
    %1303 = vmatprep.subr.bf16.mxu0 0
    %1304 = vmatpush1.bf16.msra.mxu0 0
    %1305 = vmatprep.subr.bf16.mxu0 0
    %1306 = vmatpush1.bf16.msra.mxu0 0
    %1307 = vmatprep.subr.bf16.mxu0 0
    %1308 = vmatpush1.bf16.msra.mxu0 0
    %1309 = vmatprep.subr.bf16.mxu0 0
    %1310 = vmatpush1.bf16.msra.mxu0 0
    %1311 = vmatprep.subr.bf16.mxu0 0
    %1312 = vmatpush1.bf16.msra.mxu0 %v1295
    %1313 = vmatprep.subr.bf16.mxu0 0
    %1314 = vmatpush2.bf16.msra.mxu0 0
    %1315 = vmatprep.subr.bf16.mxu0 0
    %1316 = vmatpush2.bf16.msra.mxu0 0
    %1317 = vmatprep.subr.bf16.mxu0 0
    %1318 = vmatpush2.bf16.msra.mxu0 0
    %1319 = vmatprep.subr.bf16.mxu0 0
    %1320 = vmatpush2.bf16.msra.mxu0 0
    %1321 = vmatprep.subr.bf16.mxu0 0
    %1322 = vmatpush2.bf16.msra.mxu0 0
    %1323 = vmatprep.subr.bf16.mxu0 0
    %1324 = vmatpush2.bf16.msra.mxu0 0
    %1325 = vmatprep.subr.bf16.mxu0 0
    %1326 = vmatpush2.bf16.msra.mxu0 0
    %1327 = vmatprep.subr.bf16.mxu0 0
    %1328 = vmatpush2.bf16.msra.mxu0 0
    %1329 = vmatprep.mubr.bf16.mxu0 0
    %1330 = vmatmul.mubr.bf16.gmra.mxu0 %v1292
    %v1331 = vpop.f32.mrf.mxu0
    %v1332 = vadd.f32 0.0, %v1331
    %v1333 = vpop.f32.mrf.mxu0
    %v1334 = vpop.f32.mrf.mxu0
    %v1335 = vpop.f32.mrf.mxu0
    %1336 = vdwg.mxu0
    %1337 = vrot.lane.b32.xlu0 %v417, 48
    %v1338 = vpop.permute.xlu0 %1337
    %1339 = vrot.lane.b32.xlu0 %v425, 56
    %v1340 = vpop.permute.xlu0 %1339
    %v1342 = vsel %vm432, %v1338, 0
    %v1345 = vsel %vm432, %v1340, 0
    %1347 = vmatprep.subr.bf16.mxu0 0
    %1348 = vmatpush1.bf16.xpose.msra.mxu0 0
    %1349 = vmatprep.subr.bf16.mxu0 0
    %1350 = vmatpush1.bf16.xpose.msra.mxu0 0
    %1351 = vmatprep.subr.bf16.mxu0 0
    %1352 = vmatpush1.bf16.xpose.msra.mxu0 0
    %1353 = vmatprep.subr.bf16.mxu0 0
    %1354 = vmatpush1.bf16.xpose.msra.mxu0 0
    %1355 = vmatprep.subr.bf16.mxu0 0
    %1356 = vmatpush1.bf16.xpose.msra.mxu0 0
    %1357 = vmatprep.subr.bf16.mxu0 0
    %1358 = vmatpush1.bf16.xpose.msra.mxu0 0
    %1359 = vmatprep.subr.bf16.mxu0 0
    %1360 = vmatpush1.bf16.xpose.msra.mxu0 0
    %1361 = vmatprep.subr.bf16.mxu0 0
    %1362 = vmatpush1.bf16.xpose.msra.mxu0 %v1345
    %1363 = vmatprep.subr.bf16.mxu0 0
    %1364 = vmatpush2.bf16.xpose.msra.mxu0 0
    %1365 = vmatprep.subr.bf16.mxu0 0
    %1366 = vmatpush2.bf16.xpose.msra.mxu0 0
    %1367 = vmatprep.subr.bf16.mxu0 0
    %1368 = vmatpush2.bf16.xpose.msra.mxu0 0
    %1369 = vmatprep.subr.bf16.mxu0 0
    %1370 = vmatpush2.bf16.xpose.msra.mxu0 0
    %1371 = vmatprep.subr.bf16.mxu0 0
    %1372 = vmatpush2.bf16.xpose.msra.mxu0 0
    %1373 = vmatprep.subr.bf16.mxu0 0
    %1374 = vmatpush2.bf16.xpose.msra.mxu0 0
    %1375 = vmatprep.subr.bf16.mxu0 0
    %1376 = vmatpush2.bf16.xpose.msra.mxu0 0
    %1377 = vmatprep.subr.bf16.mxu0 0
    %1378 = vmatpush2.bf16.xpose.msra.mxu0 0
    %1379 = vmatprep.mubr.bf16.mxu0 0
    %1380 = vmatmul.mubr.bf16.gmra.mxu0 %v1342
    %v1381 = vpop.f32.mrf.mxu0
    %v1382 = vadd.f32 0.0, %v1381
    %v1383 = vpop.f32.mrf.mxu0
    %v1384 = vpop.f32.mrf.mxu0
    %v1385 = vpop.f32.mrf.mxu0
    %1386 = vdwg.mxu0
    %1387 = vrot.lane.b32.xlu0 %v418, 48
    %v1388 = vpop.permute.xlu0 %1387
    %1389 = vrot.lane.b32.xlu0 %v479, 56
    %v1390 = vpop.permute.xlu0 %1389
    %v1392 = vsel %vm432, %v1388, 0
    %v1395 = vsel %vm432, %v1390, 0
    %1397 = vmatprep.subr.bf16.mxu0 0
    %1398 = vmatpush1.bf16.xpose.msra.mxu0 0
    %1399 = vmatprep.subr.bf16.mxu0 0
    %1400 = vmatpush1.bf16.xpose.msra.mxu0 0
    %1401 = vmatprep.subr.bf16.mxu0 0
    %1402 = vmatpush1.bf16.xpose.msra.mxu0 0
    %1403 = vmatprep.subr.bf16.mxu0 0
    %1404 = vmatpush1.bf16.xpose.msra.mxu0 0
    %1405 = vmatprep.subr.bf16.mxu0 0
    %1406 = vmatpush1.bf16.xpose.msra.mxu0 0
    %1407 = vmatprep.subr.bf16.mxu0 0
    %1408 = vmatpush1.bf16.xpose.msra.mxu0 0
    %1409 = vmatprep.subr.bf16.mxu0 0
    %1410 = vmatpush1.bf16.xpose.msra.mxu0 0
    %1411 = vmatprep.subr.bf16.mxu0 0
    %1412 = vmatpush1.bf16.xpose.msra.mxu0 %v1395
    %1413 = vmatprep.subr.bf16.mxu0 0
    %1414 = vmatpush2.bf16.xpose.msra.mxu0 0
    %1415 = vmatprep.subr.bf16.mxu0 0
    %1416 = vmatpush2.bf16.xpose.msra.mxu0 0
    %1417 = vmatprep.subr.bf16.mxu0 0
    %1418 = vmatpush2.bf16.xpose.msra.mxu0 0
    %1419 = vmatprep.subr.bf16.mxu0 0
    %1420 = vmatpush2.bf16.xpose.msra.mxu0 0
    %1421 = vmatprep.subr.bf16.mxu0 0
    %1422 = vmatpush2.bf16.xpose.msra.mxu0 0
    %1423 = vmatprep.subr.bf16.mxu0 0
    %1424 = vmatpush2.bf16.xpose.msra.mxu0 0
    %1425 = vmatprep.subr.bf16.mxu0 0
    %1426 = vmatpush2.bf16.xpose.msra.mxu0 0
    %1427 = vmatprep.subr.bf16.mxu0 0
    %1428 = vmatpush2.bf16.xpose.msra.mxu0 0
    %1429 = vmatprep.mubr.bf16.mxu0 0
    %1430 = vmatmul.mubr.bf16.gmra.mxu0 %v1392
    %v1431 = vpop.f32.mrf.mxu0
    %v1432 = vadd.f32 0.0, %v1431
    %v1433 = vpop.f32.mrf.mxu0
    %v1434 = vpop.f32.mrf.mxu0
    %v1435 = vpop.f32.mrf.mxu0
    %1436 = vdwg.mxu0
    %v1437 = vmul.f32 %v1382, 0.09128709
    %v1438 = vmul.f32 %v1432, 0.09128709
    %v1439 = vadd.f32 %v1437, %v413
    %v1440 = vadd.f32 %v1438, %v413
    %v1441 = vsel %vm535, %v1439, -inf
    %1442 = vmax.xlane.f32.xlu0 %v1441
    %v1443 = vpop.xlane.xlu0 %1442
    %v1444 = vsel %vm535, %v1440, -inf
    %1445 = vmax.xlane.f32.xlu0 %v1444
    %v1446 = vpop.xlane.xlu0 %1445
    %v1447 = vsub.f32 %v1439, %v1443
    %v1448 = vsub.f32 %v1440, %v1446
    %v1449 = vmul.f32 %v1447, 1.442695
    %v1450 = vpow.pop %v1449
    %v1451 = vmul.f32 %v1448, 1.442695
    %v1452 = vpow.pop %v1451
    %v1453 = vsel %vm535, %v1450, 0.0
    %1454 = vadd.xlane.f32.xlu0 %v1453
    %v1455 = vpop.xlane.xlu0 %1454
    %v1456 = vsel %vm535, %v1452, 0.0
    %1457 = vadd.xlane.f32.xlu0 %v1456
    %v1458 = vpop.xlane.xlu0 %1457
    %v1459 = vrcp.pop %v1455
    %v1460 = vrcp.pop %v1458
    %v1461 = vmul.f32 %v1450, %v1459
    %v1462 = vmul.f32 %v1452, %v1460
    %v1463 = vpack.c.bf16 %v1461, %v1461
    %v1464 = vpack.c.bf16 %v1462, %v1462
    %1465 = vrot.lane.b32.xlu0 %v560, 64
    %v1466 = vpop.permute.xlu0 %1465
    %v1468 = vsel %vm535, %v1463, 0
    %v1471 = vsel %vm316, %v1466, 0
    %1473 = vmatprep.subr.bf16.mxu0 0
    %1474 = vmatpush1.bf16.msra.mxu0 0
    %1475 = vmatprep.subr.bf16.mxu0 0
    %1476 = vmatpush1.bf16.msra.mxu0 0
    %1477 = vmatprep.subr.bf16.mxu0 0
    %1478 = vmatpush1.bf16.msra.mxu0 0
    %1479 = vmatprep.subr.bf16.mxu0 0
    %1480 = vmatpush1.bf16.msra.mxu0 0
    %1481 = vmatprep.subr.bf16.mxu0 0
    %1482 = vmatpush1.bf16.msra.mxu0 0
    %1483 = vmatprep.subr.bf16.mxu0 0
    %1484 = vmatpush1.bf16.msra.mxu0 0
    %1485 = vmatprep.subr.bf16.mxu0 0
    %1486 = vmatpush1.bf16.msra.mxu0 0
    %1487 = vmatprep.subr.bf16.mxu0 0
    %1488 = vmatpush1.bf16.msra.mxu0 %v1471
    %1489 = vmatprep.subr.bf16.mxu0 0
    %1490 = vmatpush2.bf16.msra.mxu0 0
    %1491 = vmatprep.subr.bf16.mxu0 0
    %1492 = vmatpush2.bf16.msra.mxu0 0
    %1493 = vmatprep.subr.bf16.mxu0 0
    %1494 = vmatpush2.bf16.msra.mxu0 0
    %1495 = vmatprep.subr.bf16.mxu0 0
    %1496 = vmatpush2.bf16.msra.mxu0 0
    %1497 = vmatprep.subr.bf16.mxu0 0
    %1498 = vmatpush2.bf16.msra.mxu0 0
    %1499 = vmatprep.subr.bf16.mxu0 0
    %1500 = vmatpush2.bf16.msra.mxu0 0
    %1501 = vmatprep.subr.bf16.mxu0 0
    %1502 = vmatpush2.bf16.msra.mxu0 0
    %1503 = vmatprep.subr.bf16.mxu0 0
    %1504 = vmatpush2.bf16.msra.mxu0 0
    %1505 = vmatprep.mubr.bf16.mxu0 0
    %1506 = vmatmul.mubr.bf16.gmra.mxu0 %v1468
    %v1507 = vpop.f32.mrf.mxu0
    %v1508 = vadd.f32 0.0, %v1507
    %v1509 = vpop.f32.mrf.mxu0
    %v1510 = vpop.f32.mrf.mxu0
    %v1511 = vpop.f32.mrf.mxu0
    %1512 = vdwg.mxu0
    %1513 = vrot.lane.b32.xlu0 %v613, 64
    %v1514 = vpop.permute.xlu0 %1513
    %v1516 = vsel %vm535, %v1464, 0
    %v1519 = vsel %vm316, %v1514, 0
    %1521 = vmatprep.subr.bf16.mxu0 0
    %1522 = vmatpush1.bf16.msra.mxu0 0
    %1523 = vmatprep.subr.bf16.mxu0 0
    %1524 = vmatpush1.bf16.msra.mxu0 0
    %1525 = vmatprep.subr.bf16.mxu0 0
    %1526 = vmatpush1.bf16.msra.mxu0 0
    %1527 = vmatprep.subr.bf16.mxu0 0
    %1528 = vmatpush1.bf16.msra.mxu0 0
    %1529 = vmatprep.subr.bf16.mxu0 0
    %1530 = vmatpush1.bf16.msra.mxu0 0
    %1531 = vmatprep.subr.bf16.mxu0 0
    %1532 = vmatpush1.bf16.msra.mxu0 0
    %1533 = vmatprep.subr.bf16.mxu0 0
    %1534 = vmatpush1.bf16.msra.mxu0 0
    %1535 = vmatprep.subr.bf16.mxu0 0
    %1536 = vmatpush1.bf16.msra.mxu0 %v1519
    %1537 = vmatprep.subr.bf16.mxu0 0
    %1538 = vmatpush2.bf16.msra.mxu0 0
    %1539 = vmatprep.subr.bf16.mxu0 0
    %1540 = vmatpush2.bf16.msra.mxu0 0
    %1541 = vmatprep.subr.bf16.mxu0 0
    %1542 = vmatpush2.bf16.msra.mxu0 0
    %1543 = vmatprep.subr.bf16.mxu0 0
    %1544 = vmatpush2.bf16.msra.mxu0 0
    %1545 = vmatprep.subr.bf16.mxu0 0
    %1546 = vmatpush2.bf16.msra.mxu0 0
    %1547 = vmatprep.subr.bf16.mxu0 0
    %1548 = vmatpush2.bf16.msra.mxu0 0
    %1549 = vmatprep.subr.bf16.mxu0 0
    %1550 = vmatpush2.bf16.msra.mxu0 0
    %1551 = vmatprep.subr.bf16.mxu0 0
    %1552 = vmatpush2.bf16.msra.mxu0 0
    %1553 = vmatprep.mubr.bf16.mxu0 0
    %1554 = vmatmul.mubr.bf16.gmra.mxu0 %v1516
    %v1555 = vpop.f32.mrf.mxu0
    %v1556 = vadd.f32 0.0, %v1555
    %v1557 = vpop.f32.mrf.mxu0
    %v1558 = vpop.f32.mrf.mxu0
    %v1559 = vpop.f32.mrf.mxu0
    %1560 = vdwg.mxu0
    %1561 = vrot.lane.b32.xlu0 %v417, 28
    %v1562 = vpop.permute.xlu0 %1561
    %1563 = vrot.lane.b32.xlu0 %v425, 36
    %v1564 = vpop.permute.xlu0 %1563
    %v1566 = vsel %vm432, %v1562, 0
    %v1569 = vsel %vm432, %v1564, 0
    %1571 = vmatprep.subr.bf16.mxu0 0
    %1572 = vmatpush1.bf16.xpose.msra.mxu0 0
    %1573 = vmatprep.subr.bf16.mxu0 0
    %1574 = vmatpush1.bf16.xpose.msra.mxu0 0
    %1575 = vmatprep.subr.bf16.mxu0 0
    %1576 = vmatpush1.bf16.xpose.msra.mxu0 0
    %1577 = vmatprep.subr.bf16.mxu0 0
    %1578 = vmatpush1.bf16.xpose.msra.mxu0 0
    %1579 = vmatprep.subr.bf16.mxu0 0
    %1580 = vmatpush1.bf16.xpose.msra.mxu0 0
    %1581 = vmatprep.subr.bf16.mxu0 0
    %1582 = vmatpush1.bf16.xpose.msra.mxu0 0
    %1583 = vmatprep.subr.bf16.mxu0 0
    %1584 = vmatpush1.bf16.xpose.msra.mxu0 0
    %1585 = vmatprep.subr.bf16.mxu0 0
    %1586 = vmatpush1.bf16.xpose.msra.mxu0 %v1569
    %1587 = vmatprep.subr.bf16.mxu0 0
    %1588 = vmatpush2.bf16.xpose.msra.mxu0 0
    %1589 = vmatprep.subr.bf16.mxu0 0
    %1590 = vmatpush2.bf16.xpose.msra.mxu0 0
    %1591 = vmatprep.subr.bf16.mxu0 0
    %1592 = vmatpush2.bf16.xpose.msra.mxu0 0
    %1593 = vmatprep.subr.bf16.mxu0 0
    %1594 = vmatpush2.bf16.xpose.msra.mxu0 0
    %1595 = vmatprep.subr.bf16.mxu0 0
    %1596 = vmatpush2.bf16.xpose.msra.mxu0 0
    %1597 = vmatprep.subr.bf16.mxu0 0
    %1598 = vmatpush2.bf16.xpose.msra.mxu0 0
    %1599 = vmatprep.subr.bf16.mxu0 0
    %1600 = vmatpush2.bf16.xpose.msra.mxu0 0
    %1601 = vmatprep.subr.bf16.mxu0 0
    %1602 = vmatpush2.bf16.xpose.msra.mxu0 0
    %1603 = vmatprep.mubr.bf16.mxu0 0
    %1604 = vmatmul.mubr.bf16.gmra.mxu0 %v1566
    %v1605 = vpop.f32.mrf.mxu0
    %v1606 = vadd.f32 0.0, %v1605
    %v1607 = vpop.f32.mrf.mxu0
    %v1608 = vpop.f32.mrf.mxu0
    %v1609 = vpop.f32.mrf.mxu0
    %1610 = vdwg.mxu0
    %1611 = vrot.lane.b32.xlu0 %v418, 28
    %v1612 = vpop.permute.xlu0 %1611
    %1613 = vrot.lane.b32.xlu0 %v479, 36
    %v1614 = vpop.permute.xlu0 %1613
    %v1616 = vsel %vm432, %v1612, 0
    %v1619 = vsel %vm432, %v1614, 0
    %1621 = vmatprep.subr.bf16.mxu0 0
    %1622 = vmatpush1.bf16.xpose.msra.mxu0 0
    %1623 = vmatprep.subr.bf16.mxu0 0
    %1624 = vmatpush1.bf16.xpose.msra.mxu0 0
    %1625 = vmatprep.subr.bf16.mxu0 0
    %1626 = vmatpush1.bf16.xpose.msra.mxu0 0
    %1627 = vmatprep.subr.bf16.mxu0 0
    %1628 = vmatpush1.bf16.xpose.msra.mxu0 0
    %1629 = vmatprep.subr.bf16.mxu0 0
    %1630 = vmatpush1.bf16.xpose.msra.mxu0 0
    %1631 = vmatprep.subr.bf16.mxu0 0
    %1632 = vmatpush1.bf16.xpose.msra.mxu0 0
    %1633 = vmatprep.subr.bf16.mxu0 0
    %1634 = vmatpush1.bf16.xpose.msra.mxu0 0
    %1635 = vmatprep.subr.bf16.mxu0 0
    %1636 = vmatpush1.bf16.xpose.msra.mxu0 %v1619
    %1637 = vmatprep.subr.bf16.mxu0 0
    %1638 = vmatpush2.bf16.xpose.msra.mxu0 0
    %1639 = vmatprep.subr.bf16.mxu0 0
    %1640 = vmatpush2.bf16.xpose.msra.mxu0 0
    %1641 = vmatprep.subr.bf16.mxu0 0
    %1642 = vmatpush2.bf16.xpose.msra.mxu0 0
    %1643 = vmatprep.subr.bf16.mxu0 0
    %1644 = vmatpush2.bf16.xpose.msra.mxu0 0
    %1645 = vmatprep.subr.bf16.mxu0 0
    %1646 = vmatpush2.bf16.xpose.msra.mxu0 0
    %1647 = vmatprep.subr.bf16.mxu0 0
    %1648 = vmatpush2.bf16.xpose.msra.mxu0 0
    %1649 = vmatprep.subr.bf16.mxu0 0
    %1650 = vmatpush2.bf16.xpose.msra.mxu0 0
    %1651 = vmatprep.subr.bf16.mxu0 0
    %1652 = vmatpush2.bf16.xpose.msra.mxu0 0
    %1653 = vmatprep.mubr.bf16.mxu0 0
    %1654 = vmatmul.mubr.bf16.gmra.mxu0 %v1616
    %v1655 = vpop.f32.mrf.mxu0
    %v1656 = vadd.f32 0.0, %v1655
    %v1657 = vpop.f32.mrf.mxu0
    %v1658 = vpop.f32.mrf.mxu0
    %v1659 = vpop.f32.mrf.mxu0
    %1660 = vdwg.mxu0
    %v1661 = vmul.f32 %v1606, 0.09128709
    %v1662 = vmul.f32 %v1656, 0.09128709
    %v1663 = vadd.f32 %v1661, %v413
    %v1664 = vadd.f32 %v1662, %v413
    %v1665 = vsel %vm535, %v1663, -inf
    %1666 = vmax.xlane.f32.xlu0 %v1665
    %v1667 = vpop.xlane.xlu0 %1666
    %v1668 = vsel %vm535, %v1664, -inf
    %1669 = vmax.xlane.f32.xlu0 %v1668
    %v1670 = vpop.xlane.xlu0 %1669
    %v1671 = vsub.f32 %v1663, %v1667
    %v1672 = vsub.f32 %v1664, %v1670
    %v1673 = vmul.f32 %v1671, 1.442695
    %v1674 = vpow.pop %v1673
    %v1675 = vmul.f32 %v1672, 1.442695
    %v1676 = vpow.pop %v1675
    %v1677 = vsel %vm535, %v1674, 0.0
    %1678 = vadd.xlane.f32.xlu0 %v1677
    %v1679 = vpop.xlane.xlu0 %1678
    %v1680 = vsel %vm535, %v1676, 0.0
    %1681 = vadd.xlane.f32.xlu0 %v1680
    %v1682 = vpop.xlane.xlu0 %1681
    %v1683 = vrcp.pop %v1679
    %v1684 = vrcp.pop %v1682
    %v1685 = vmul.f32 %v1674, %v1683
    %v1686 = vmul.f32 %v1676, %v1684
    %v1687 = vpack.c.bf16 %v1685, %v1685
    %v1688 = vpack.c.bf16 %v1686, %v1686
    %1689 = vrot.lane.b32.xlu0 %v560, 44
    %v1690 = vpop.permute.xlu0 %1689
    %v1692 = vsel %vm535, %v1687, 0
    %v1695 = vsel %vm316, %v1690, 0
    %1697 = vmatprep.subr.bf16.mxu0 0
    %1698 = vmatpush1.bf16.msra.mxu0 0
    %1699 = vmatprep.subr.bf16.mxu0 0
    %1700 = vmatpush1.bf16.msra.mxu0 0
    %1701 = vmatprep.subr.bf16.mxu0 0
    %1702 = vmatpush1.bf16.msra.mxu0 0
    %1703 = vmatprep.subr.bf16.mxu0 0
    %1704 = vmatpush1.bf16.msra.mxu0 0
    %1705 = vmatprep.subr.bf16.mxu0 0
    %1706 = vmatpush1.bf16.msra.mxu0 0
    %1707 = vmatprep.subr.bf16.mxu0 0
    %1708 = vmatpush1.bf16.msra.mxu0 0
    %1709 = vmatprep.subr.bf16.mxu0 0
    %1710 = vmatpush1.bf16.msra.mxu0 0
    %1711 = vmatprep.subr.bf16.mxu0 0
    %1712 = vmatpush1.bf16.msra.mxu0 %v1695
    %1713 = vmatprep.subr.bf16.mxu0 0
    %1714 = vmatpush2.bf16.msra.mxu0 0
    %1715 = vmatprep.subr.bf16.mxu0 0
    %1716 = vmatpush2.bf16.msra.mxu0 0
    %1717 = vmatprep.subr.bf16.mxu0 0
    %1718 = vmatpush2.bf16.msra.mxu0 0
    %1719 = vmatprep.subr.bf16.mxu0 0
    %1720 = vmatpush2.bf16.msra.mxu0 0
    %1721 = vmatprep.subr.bf16.mxu0 0
    %1722 = vmatpush2.bf16.msra.mxu0 0
    %1723 = vmatprep.subr.bf16.mxu0 0
    %1724 = vmatpush2.bf16.msra.mxu0 0
    %1725 = vmatprep.subr.bf16.mxu0 0
    %1726 = vmatpush2.bf16.msra.mxu0 0
    %1727 = vmatprep.subr.bf16.mxu0 0
    %1728 = vmatpush2.bf16.msra.mxu0 0
    %1729 = vmatprep.mubr.bf16.mxu0 0
    %1730 = vmatmul.mubr.bf16.gmra.mxu0 %v1692
    %v1731 = vpop.f32.mrf.mxu0
    %v1732 = vadd.f32 0.0, %v1731
    %v1733 = vpop.f32.mrf.mxu0
    %v1734 = vpop.f32.mrf.mxu0
    %v1735 = vpop.f32.mrf.mxu0
    %1736 = vdwg.mxu0
    %1737 = vrot.lane.b32.xlu0 %v613, 44
    %v1738 = vpop.permute.xlu0 %1737
    %v1740 = vsel %vm535, %v1688, 0
    %v1743 = vsel %vm316, %v1738, 0
    %1745 = vmatprep.subr.bf16.mxu0 0
    %1746 = vmatpush1.bf16.msra.mxu0 0
    %1747 = vmatprep.subr.bf16.mxu0 0
    %1748 = vmatpush1.bf16.msra.mxu0 0
    %1749 = vmatprep.subr.bf16.mxu0 0
    %1750 = vmatpush1.bf16.msra.mxu0 0
    %1751 = vmatprep.subr.bf16.mxu0 0
    %1752 = vmatpush1.bf16.msra.mxu0 0
    %1753 = vmatprep.subr.bf16.mxu0 0
    %1754 = vmatpush1.bf16.msra.mxu0 0
    %1755 = vmatprep.subr.bf16.mxu0 0
    %1756 = vmatpush1.bf16.msra.mxu0 0
    %1757 = vmatprep.subr.bf16.mxu0 0
    %1758 = vmatpush1.bf16.msra.mxu0 0
    %1759 = vmatprep.subr.bf16.mxu0 0
    %1760 = vmatpush1.bf16.msra.mxu0 %v1743
    %1761 = vmatprep.subr.bf16.mxu0 0
    %1762 = vmatpush2.bf16.msra.mxu0 0
    %1763 = vmatprep.subr.bf16.mxu0 0
    %1764 = vmatpush2.bf16.msra.mxu0 0
    %1765 = vmatprep.subr.bf16.mxu0 0
    %1766 = vmatpush2.bf16.msra.mxu0 0
    %1767 = vmatprep.subr.bf16.mxu0 0
    %1768 = vmatpush2.bf16.msra.mxu0 0
    %1769 = vmatprep.subr.bf16.mxu0 0
    %1770 = vmatpush2.bf16.msra.mxu0 0
    %1771 = vmatprep.subr.bf16.mxu0 0
    %1772 = vmatpush2.bf16.msra.mxu0 0
    %1773 = vmatprep.subr.bf16.mxu0 0
    %1774 = vmatpush2.bf16.msra.mxu0 0
    %1775 = vmatprep.subr.bf16.mxu0 0
    %1776 = vmatpush2.bf16.msra.mxu0 0
    %1777 = vmatprep.mubr.bf16.mxu0 0
    %1778 = vmatmul.mubr.bf16.gmra.mxu0 %v1740
    %v1779 = vpop.f32.mrf.mxu0
    %v1780 = vadd.f32 0.0, %v1779
    %v1781 = vpop.f32.mrf.mxu0
    %v1782 = vpop.f32.mrf.mxu0
    %v1783 = vpop.f32.mrf.mxu0
    %1784 = vdwg.mxu0
    %1787 = vrot.lane.b32.xlu0 %v836, 20
    %v1788 = vpop.permute.xlu0 %1787
    %1789 = vrot.lane.b32.xlu0 %v884, 20
    %v1790 = vpop.permute.xlu0 %1789
    %1795 = vrot.lane.b32.xlu0 %v1060, 40
    %v1796 = vpop.permute.xlu0 %1795
    %1797 = vrot.lane.b32.xlu0 %v1108, 40
    %v1798 = vpop.permute.xlu0 %1797
    %1803 = vrot.lane.b32.xlu0 %v1284, 60
    %v1804 = vpop.permute.xlu0 %1803
    %1805 = vrot.lane.b32.xlu0 %v1332, 60
    %v1806 = vpop.permute.xlu0 %1805
    %1811 = vrot.lane.b32.xlu0 %v1508, 80
    %v1812 = vpop.permute.xlu0 %1811
    %1813 = vrot.lane.b32.xlu0 %v1556, 80
    %v1814 = vpop.permute.xlu0 %1813
    %1819 = vrot.lane.b32.xlu0 %v1732, 100
    %v1820 = vpop.permute.xlu0 %1819
    %1821 = vrot.lane.b32.xlu0 %v1780, 100
    %v1822 = vpop.permute.xlu0 %1821
    %v1825 = vsel %vm432, %v608, %v1788
    %v1826 = vsel %vm432, %v660, %v1790
    %vm1827 = vcmask 326656
    %v1828 = vsel %vm1827, %v1825, %v1796
    %v1829 = vsel %vm1827, %v1826, %v1798
    %vm1830 = vcmask 490496
    %v1831 = vsel %vm1830, %v1828, %v1804
    %v1832 = vsel %vm1830, %v1829, %v1806
    %vm1833 = vcmask 654336
    %v1834 = vsel %vm1833, %v1831, %v1812
    %v1835 = vsel %vm1833, %v1832, %v1814
    %vm1836 = vcmask 818176
    %v1837 = vsel %vm1836, %v1834, %v1820
    %v1838 = vsel %vm1836, %v1835, %v1822
    %v1839 = vpack.c.bf16 %v1838, %v1837
    %v1840 = vld [vmem:[#allocation7] sm:$0xf]
    %v1841 = vld [vmem:[#allocation7 + $0x4] sm:$0xf]
    %v1842 = vld [vmem:[#allocation7 + $0x8] sm:$0xf]
    %v1843 = vld [vmem:[#allocation7 + $0xc] sm:$0xf]
    %v1844 = vld [vmem:[#allocation7 + $0x10] sm:$0xf]
    %v1845 = vld [vmem:[#allocation7 + $0x14] sm:$0xf]
    %v1846 = vld [vmem:[#allocation7 + $0x18] sm:$0xf]
    %v1847 = vld [vmem:[#allocation7 + $0x1c] sm:$0xf]
    %v1848 = vld [vmem:[#allocation7 + $0x20] sm:$0xf]
    %v1849 = vld [vmem:[#allocation7 + $0x24] sm:$0xf]
    %v1850 = vld [vmem:[#allocation7 + $0x28] sm:$0xf]
    %v1851 = vld [vmem:[#allocation7 + $0x2c] sm:$0xf]
    %v1852 = vld [vmem:[#allocation7 + $0x30] sm:$0xf]
    %v1853 = vld [vmem:[#allocation7 + $0x34] sm:$0xf]
    %v1854 = vld [vmem:[#allocation7 + $0x38] sm:$0xf]
    %v1855 = vld [vmem:[%s6] sm:$0x1]
    %v1857 = vlaneseq
    %v1858 = vshrl.u32 %v1857, 7
    %v1859 = vsub.s32 0, %v1858
    %v1860 = vrot.slane %v1855, %v1859
    %v1877 = vunpack.c.l.b16 %v1840
    %v1878 = vunpack.c.l.b16 %v1841
    %v1879 = vunpack.c.l.b16 %v1842
    %v1880 = vunpack.c.l.b16 %v1843
    %v1881 = vunpack.c.l.b16 %v1844
    %v1882 = vunpack.c.l.b16 %v1845
    %v1883 = vunpack.c.l.b16 %v1846
    %v1884 = vunpack.c.l.b16 %v1847
    %v1885 = vunpack.c.l.b16 %v1848
    %v1886 = vunpack.c.l.b16 %v1849
    %v1887 = vunpack.c.l.b16 %v1850
    %v1888 = vunpack.c.l.b16 %v1851
    %v1889 = vunpack.c.l.b16 %v1852
    %v1890 = vunpack.c.l.b16 %v1853
    %v1891 = vunpack.c.l.b16 %v1854
    %v1892 = vpack.c.b16 %v1878, %v1877
    %v1893 = vpack.c.b16 %v1880, %v1879
    %v1894 = vpack.c.b16 %v1882, %v1881
    %v1895 = vpack.c.b16 %v1884, %v1883
    %v1896 = vpack.c.b16 %v1886, %v1885
    %v1897 = vpack.c.b16 %v1888, %v1887
    %v1898 = vpack.c.b16 %v1890, %v1889
    %v1899 = vpack.c.b16 %v1891, %v1891
    %v1908 = vsel %vm118, %v1839, 0
    %v1911 = vsel %vm316, %v1899, 0
    %1913 = vmatprep.subr.bf16.mxu0 0
    %1914 = vmatpush1.bf16.msra.mxu0 %v1911
    %1915 = vmatprep.subr.bf16.mxu0 0
    %1916 = vmatpush1.bf16.msra.mxu0 %v1898
    %1917 = vmatprep.subr.bf16.mxu0 0
    %1918 = vmatpush1.bf16.msra.mxu0 %v1897
    %1919 = vmatprep.subr.bf16.mxu0 0
    %1920 = vmatpush1.bf16.msra.mxu0 %v1896
    %1921 = vmatprep.subr.bf16.mxu0 0
    %1922 = vmatpush1.bf16.msra.mxu0 %v1895
    %1923 = vmatprep.subr.bf16.mxu0 0
    %1924 = vmatpush1.bf16.msra.mxu0 %v1894
    %1925 = vmatprep.subr.bf16.mxu0 0
    %1926 = vmatpush1.bf16.msra.mxu0 %v1893
    %1927 = vmatprep.subr.bf16.mxu0 0
    %1928 = vmatpush1.bf16.msra.mxu0 %v1892
    %1929 = vmatprep.subr.bf16.mxu0 0
    %1930 = vmatpush2.bf16.msra.mxu0 0
    %1931 = vmatprep.subr.bf16.mxu0 0
    %1932 = vmatpush2.bf16.msra.mxu0 0
    %1933 = vmatprep.subr.bf16.mxu0 0
    %1934 = vmatpush2.bf16.msra.mxu0 0
    %1935 = vmatprep.subr.bf16.mxu0 0
    %1936 = vmatpush2.bf16.msra.mxu0 0
    %1937 = vmatprep.subr.bf16.mxu0 0
    %1938 = vmatpush2.bf16.msra.mxu0 0
    %1939 = vmatprep.subr.bf16.mxu0 0
    %1940 = vmatpush2.bf16.msra.mxu0 0
    %1941 = vmatprep.subr.bf16.mxu0 0
    %1942 = vmatpush2.bf16.msra.mxu0 0
    %1943 = vmatprep.subr.bf16.mxu0 0
    %1944 = vmatpush2.bf16.msra.mxu0 0
    %1945 = vmatprep.mubr.bf16.mxu0 0
    %1946 = vmatmul.mubr.bf16.gmra.mxu0 %v1908
    %v1947 = vpop.f32.mrf.mxu0
    %v1948 = vadd.f32 %v1860, %v1947
    %v1949 = vpop.f32.mrf.mxu0
    %v1950 = vpop.f32.mrf.mxu0
    %v1951 = vadd.f32 %v1860, %v1950
    %v1952 = vpop.f32.mrf.mxu0
    %1953 = vdwg.mxu0
    %v1954 = vadd.f32 %v114, %v1948
    %v1955 = vadd.f32 %v115, %v1951
    %v1956 = vld [vmem:[%s7] sm:$0x1]
    %v1957 = vld [vmem:[%s8] sm:$0x1]
    %v1958 = vsel %vm118, %v1954, 0.0
    %1959 = vadd.xlane.f32.xlu0 %v1958
    %v1960 = vpop.xlane.xlu0 %1959
    %v1961 = vsel %vm118, %v1955, 0.0
    %1962 = vadd.xlane.f32.xlu0 %v1961
    %v1963 = vpop.xlane.xlu0 %1962
    %v1964 = vmul.f32 %v1960, %v125
    %v1965 = vmul.f32 %v1963, %v125
    %v1966 = vsub.f32 %v1954, %v1964
    %v1967 = vsub.f32 %v1955, %v1965
    %v1968 = vmul.f32 %v1966, %v1966
    %v1969 = vmul.f32 %v1967, %v1967
    %v1970 = vsel %vm118, %v1968, 0.0
    %1971 = vadd.xlane.f32.xlu0 %v1970
    %v1972 = vpop.xlane.xlu0 %1971
    %v1973 = vsel %vm118, %v1969, 0.0
    %1974 = vadd.xlane.f32.xlu0 %v1973
    %v1975 = vpop.xlane.xlu0 %1974
    %v1976 = vmul.f32 %v1972, %v125
    %v1977 = vmul.f32 %v1975, %v125
    %v1978 = vadd.f32 %v1976, 1e-05
    %v1979 = vadd.f32 %v1977, 1e-05
    %v1980 = vrsqrt.pop %v1978
    %v1981 = vrsqrt.pop %v1979
    %v1982 = vmul.f32 %v1966, %v1980
    %v1983 = vmul.f32 %v1967, %v1981
    %v1985 = vlaneseq
    %v1986 = vshrl.u32 %v1985, 7
    %v1987 = vsub.s32 0, %v1986
    %v1988 = vrot.slane %v1956, %v1987
    %v1990 = vmul.f32 %v1982, %v1988
    %v1991 = vmul.f32 %v1983, %v1988
    %v1993 = vlaneseq
    %v1994 = vshrl.u32 %v1993, 7
    %v1995 = vsub.s32 0, %v1994
    %v1996 = vrot.slane %v1957, %v1995
    %v1998 = vadd.f32 %v1990, %v1996
    %v1999 = vadd.f32 %v1991, %v1996
    %v2000 = vpack.c.bf16 %v1999, %v1998
    %v2001 = vld [vmem:[#allocation8] sm:$0xff]
    %v2002 = vld [vmem:[#allocation8 + $0x8] sm:$0xff]
    %v2003 = vld [vmem:[#allocation8 + $0x10] sm:$0xff]
    %v2004 = vld [vmem:[#allocation8 + $0x18] sm:$0xff]
    %v2005 = vld [vmem:[#allocation8 + $0x20] sm:$0xff]
    %v2006 = vld [vmem:[#allocation8 + $0x28] sm:$0xff]
    %v2007 = vld [vmem:[#allocation8 + $0x30] sm:$0xff]
    %v2008 = vld [vmem:[#allocation8 + $0x38] sm:$0xff]
    %v2009 = vld [vmem:[#allocation8 + $0x40] sm:$0xff]
    %v2010 = vld [vmem:[#allocation8 + $0x48] sm:$0xff]
    %v2011 = vld [vmem:[#allocation8 + $0x50] sm:$0xff]
    %v2012 = vld [vmem:[#allocation8 + $0x58] sm:$0xff]
    %v2013 = vld [vmem:[#allocation8 + $0x60] sm:$0xff]
    %v2014 = vld [vmem:[#allocation8 + $0x68] sm:$0xff]
    %v2015 = vld [vmem:[#allocation8 + $0x70] sm:$0xff]
    %v2016 = vld [vmem:[#allocation8 + $0x78] sm:$0xff]
    %v2017 = vld [vmem:[#allocation8 + $0x80] sm:$0xff]
    %v2018 = vld [vmem:[#allocation8 + $0x88] sm:$0xff]
    %v2019 = vld [vmem:[#allocation8 + $0x90] sm:$0xff]
    %v2020 = vld [vmem:[#allocation8 + $0x98] sm:$0xff]
    %v2021 = vld [vmem:[#allocation8 + $0xa0] sm:$0xff]
    %v2022 = vld [vmem:[#allocation8 + $0xa8] sm:$0xff]
    %v2023 = vld [vmem:[#allocation8 + $0xb0] sm:$0xff]
    %v2024 = vld [vmem:[#allocation8 + $0xb8] sm:$0xff]
    %v2025 = vld [vmem:[#allocation8 + $0xc0] sm:$0xff]
    %v2026 = vld [vmem:[#allocation8 + $0xc8] sm:$0xff]
    %v2027 = vld [vmem:[#allocation8 + $0xd0] sm:$0xff]
    %v2028 = vld [vmem:[#allocation8 + $0xd8] sm:$0xff]
    %v2029 = vld [vmem:[#allocation8 + $0xe0] sm:$0xff]
    %v2030 = vld [vmem:[#allocation8 + $0xe8] sm:$0xff]
    %v2031 = vld [vmem:[%s10] sm:$0xf]
    %v2033 = vlaneseq
    %v2034 = vshrl.u32 %v2033, 7
    %v2035 = vsub.s32 0, %v2034
    %v2036 = vrot.slane %v2031, %v2035
    %v2037 = vlaneseq
    %v2038 = vshrl.u32 %v2037, 7
    %v2039 = vsub.s32 1, %v2038
    %v2040 = vrot.slane %v2031, %v2039
    %v2041 = vlaneseq
    %v2042 = vshrl.u32 %v2041, 7
    %v2043 = vsub.s32 2, %v2042
    %v2044 = vrot.slane %v2031, %v2043
    %v2045 = vlaneseq
    %v2046 = vshrl.u32 %v2045, 7
    %v2047 = vsub.s32 3, %v2046
    %v2048 = vrot.slane %v2031, %v2047
    %v2083 = vunpack.c.l.b16 %v2001
    %v2084 = vunpack.c.h.b16 %v2001
    %v2085 = vunpack.c.l.b16 %v2002
    %v2086 = vunpack.c.h.b16 %v2002
    %v2087 = vunpack.c.l.b16 %v2003
    %v2088 = vunpack.c.h.b16 %v2003
    %v2089 = vunpack.c.l.b16 %v2004
    %v2090 = vunpack.c.h.b16 %v2004
    %v2091 = vunpack.c.l.b16 %v2005
    %v2092 = vunpack.c.h.b16 %v2005
    %v2093 = vunpack.c.l.b16 %v2006
    %v2094 = vunpack.c.h.b16 %v2006
    %v2095 = vunpack.c.l.b16 %v2007
    %v2096 = vunpack.c.h.b16 %v2007
    %v2097 = vunpack.c.l.b16 %v2008
    %v2098 = vunpack.c.h.b16 %v2008
    %v2099 = vunpack.c.l.b16 %v2009
    %v2100 = vunpack.c.h.b16 %v2009
    %v2101 = vunpack.c.l.b16 %v2010
    %v2102 = vunpack.c.h.b16 %v2010
    %v2103 = vunpack.c.l.b16 %v2011
    %v2104 = vunpack.c.h.b16 %v2011
    %v2105 = vunpack.c.l.b16 %v2012
    %v2106 = vunpack.c.h.b16 %v2012
    %v2107 = vunpack.c.l.b16 %v2013
    %v2108 = vunpack.c.h.b16 %v2013
    %v2109 = vunpack.c.l.b16 %v2014
    %v2110 = vunpack.c.h.b16 %v2014
    %v2111 = vunpack.c.l.b16 %v2015
    %v2112 = vunpack.c.h.b16 %v2015
    %v2113 = vunpack.c.l.b16 %v2016
    %v2114 = vunpack.c.h.b16 %v2016
    %v2115 = vunpack.c.l.b16 %v2017
    %v2116 = vunpack.c.h.b16 %v2017
    %v2117 = vunpack.c.l.b16 %v2018
    %v2118 = vunpack.c.h.b16 %v2018
    %v2119 = vunpack.c.l.b16 %v2019
    %v2120 = vunpack.c.h.b16 %v2019
    %v2121 = vunpack.c.l.b16 %v2020
    %v2122 = vunpack.c.h.b16 %v2020
    %v2123 = vunpack.c.l.b16 %v2021
    %v2124 = vunpack.c.h.b16 %v2021
    %v2125 = vunpack.c.l.b16 %v2022
    %v2126 = vunpack.c.h.b16 %v2022
    %v2127 = vunpack.c.l.b16 %v2023
    %v2128 = vunpack.c.h.b16 %v2023
    %v2129 = vunpack.c.l.b16 %v2024
    %v2130 = vunpack.c.h.b16 %v2024
    %v2131 = vunpack.c.l.b16 %v2025
    %v2132 = vunpack.c.h.b16 %v2025
    %v2133 = vunpack.c.l.b16 %v2026
    %v2134 = vunpack.c.h.b16 %v2026
    %v2135 = vunpack.c.l.b16 %v2027
    %v2136 = vunpack.c.h.b16 %v2027
    %v2137 = vunpack.c.l.b16 %v2028
    %v2138 = vunpack.c.h.b16 %v2028
    %v2139 = vunpack.c.l.b16 %v2029
    %v2140 = vunpack.c.h.b16 %v2029
    %v2141 = vunpack.c.l.b16 %v2030
    %v2142 = vunpack.c.h.b16 %v2030
    %v2143 = vpack.c.b16 %v2087, %v2083
    %v2144 = vpack.c.b16 %v2088, %v2084
    %v2145 = vpack.c.b16 %v2089, %v2085
    %v2146 = vpack.c.b16 %v2090, %v2086
    %v2147 = vpack.c.b16 %v2095, %v2091
    %v2148 = vpack.c.b16 %v2096, %v2092
    %v2149 = vpack.c.b16 %v2097, %v2093
    %v2150 = vpack.c.b16 %v2098, %v2094
    %v2151 = vpack.c.b16 %v2103, %v2099
    %v2152 = vpack.c.b16 %v2104, %v2100
    %v2153 = vpack.c.b16 %v2105, %v2101
    %v2154 = vpack.c.b16 %v2106, %v2102
    %v2155 = vpack.c.b16 %v2111, %v2107
    %v2156 = vpack.c.b16 %v2112, %v2108
    %v2157 = vpack.c.b16 %v2113, %v2109
    %v2158 = vpack.c.b16 %v2114, %v2110
    %v2159 = vpack.c.b16 %v2119, %v2115
    %v2160 = vpack.c.b16 %v2120, %v2116
    %v2161 = vpack.c.b16 %v2121, %v2117
    %v2162 = vpack.c.b16 %v2122, %v2118
    %v2163 = vpack.c.b16 %v2127, %v2123
    %v2164 = vpack.c.b16 %v2128, %v2124
    %v2165 = vpack.c.b16 %v2129, %v2125
    %v2166 = vpack.c.b16 %v2130, %v2126
    %v2167 = vpack.c.b16 %v2135, %v2131
    %v2168 = vpack.c.b16 %v2136, %v2132
    %v2169 = vpack.c.b16 %v2137, %v2133
    %v2170 = vpack.c.b16 %v2138, %v2134
    %v2171 = vpack.c.b16 %v2139, %v2139
    %v2172 = vpack.c.b16 %v2140, %v2140
    %v2173 = vpack.c.b16 %v2141, %v2141
    %v2174 = vpack.c.b16 %v2142, %v2142
    %v2204 = vsel %vm118, %v2000, 0
    %v2207 = vsel %vm316, %v2171, 0
    %v2210 = vsel %vm316, %v2172, 0
    %v2213 = vsel %vm316, %v2173, 0
    %v2216 = vsel %vm316, %v2174, 0
    %2218 = vmatprep.subr.bf16.mxu0 %v2210
    %2219 = vmatpush1.bf16.msra.mxu0 %v2207
    %2220 = vmatprep.subr.bf16.mxu0 %v2168
    %2221 = vmatpush1.bf16.msra.mxu0 %v2167
    %2222 = vmatprep.subr.bf16.mxu0 %v2164
    %2223 = vmatpush1.bf16.msra.mxu0 %v2163
    %2224 = vmatprep.subr.bf16.mxu0 %v2160
    %2225 = vmatpush1.bf16.msra.mxu0 %v2159
    %2226 = vmatprep.subr.bf16.mxu0 %v2156
    %2227 = vmatpush1.bf16.msra.mxu0 %v2155
    %2228 = vmatprep.subr.bf16.mxu0 %v2152
    %2229 = vmatpush1.bf16.msra.mxu0 %v2151
    %2230 = vmatprep.subr.bf16.mxu0 %v2148
    %2231 = vmatpush1.bf16.msra.mxu0 %v2147
    %2232 = vmatprep.subr.bf16.mxu0 %v2144
    %2233 = vmatpush1.bf16.msra.mxu0 %v2143
    %2234 = vmatprep.subr.bf16.mxu0 0
    %2235 = vmatpush2.bf16.msra.mxu0 0
    %2236 = vmatprep.subr.bf16.mxu0 0
    %2237 = vmatpush2.bf16.msra.mxu0 0
    %2238 = vmatprep.subr.bf16.mxu0 0
    %2239 = vmatpush2.bf16.msra.mxu0 0
    %2240 = vmatprep.subr.bf16.mxu0 0
    %2241 = vmatpush2.bf16.msra.mxu0 0
    %2242 = vmatprep.subr.bf16.mxu0 0
    %2243 = vmatpush2.bf16.msra.mxu0 0
    %2244 = vmatprep.subr.bf16.mxu0 0
    %2245 = vmatpush2.bf16.msra.mxu0 0
    %2246 = vmatprep.subr.bf16.mxu0 0
    %2247 = vmatpush2.bf16.msra.mxu0 0
    %2248 = vmatprep.subr.bf16.mxu0 0
    %2249 = vmatpush2.bf16.msra.mxu0 0
    %2250 = vmatprep.mubr.bf16.mxu0 0
    %2251 = vmatmul.mubr.bf16.gmra.mxu0 %v2204
    %v2252 = vpop.f32.mrf.mxu0
    %v2253 = vadd.f32 %v2036, %v2252
    %v2254 = vpop.f32.mrf.mxu0
    %v2255 = vadd.f32 %v2040, %v2254
    %v2256 = vpop.f32.mrf.mxu0
    %v2257 = vadd.f32 %v2036, %v2256
    %v2258 = vpop.f32.mrf.mxu0
    %v2259 = vadd.f32 %v2040, %v2258
    %2260 = vdwg.mxu0
    %2261 = vmatprep.subr.bf16.mxu0 %v2216
    %2262 = vmatpush1.bf16.msra.mxu0 %v2213
    %2263 = vmatprep.subr.bf16.mxu0 %v2170
    %2264 = vmatpush1.bf16.msra.mxu0 %v2169
    %2265 = vmatprep.subr.bf16.mxu0 %v2166
    %2266 = vmatpush1.bf16.msra.mxu0 %v2165
    %2267 = vmatprep.subr.bf16.mxu0 %v2162
    %2268 = vmatpush1.bf16.msra.mxu0 %v2161
    %2269 = vmatprep.subr.bf16.mxu0 %v2158
    %2270 = vmatpush1.bf16.msra.mxu0 %v2157
    %2271 = vmatprep.subr.bf16.mxu0 %v2154
    %2272 = vmatpush1.bf16.msra.mxu0 %v2153
    %2273 = vmatprep.subr.bf16.mxu0 %v2150
    %2274 = vmatpush1.bf16.msra.mxu0 %v2149
    %2275 = vmatprep.subr.bf16.mxu0 %v2146
    %2276 = vmatpush1.bf16.msra.mxu0 %v2145
    %2277 = vmatprep.subr.bf16.mxu0 0
    %2278 = vmatpush2.bf16.msra.mxu0 0
    %2279 = vmatprep.subr.bf16.mxu0 0
    %2280 = vmatpush2.bf16.msra.mxu0 0
    %2281 = vmatprep.subr.bf16.mxu0 0
    %2282 = vmatpush2.bf16.msra.mxu0 0
    %2283 = vmatprep.subr.bf16.mxu0 0
    %2284 = vmatpush2.bf16.msra.mxu0 0
    %2285 = vmatprep.subr.bf16.mxu0 0
    %2286 = vmatpush2.bf16.msra.mxu0 0
    %2287 = vmatprep.subr.bf16.mxu0 0
    %2288 = vmatpush2.bf16.msra.mxu0 0
    %2289 = vmatprep.subr.bf16.mxu0 0
    %2290 = vmatpush2.bf16.msra.mxu0 0
    %2291 = vmatprep.subr.bf16.mxu0 0
    %2292 = vmatpush2.bf16.msra.mxu0 0
    %2293 = vmatprep.mubr.bf16.mxu0 0
    %2294 = vmatmul.mubr.bf16.gmra.mxu0 %v2204
    %v2295 = vpop.f32.mrf.mxu0
    %v2296 = vadd.f32 %v2044, %v2295
    %v2297 = vpop.f32.mrf.mxu0
    %v2298 = vadd.f32 %v2048, %v2297
    %v2299 = vpop.f32.mrf.mxu0
    %v2300 = vadd.f32 %v2044, %v2299
    %v2301 = vpop.f32.mrf.mxu0
    %v2302 = vadd.f32 %v2048, %v2301
    %2303 = vdwg.mxu0
    %v2304 = vmax.f32 %v2253, 0.0
    %v2305 = vmax.f32 %v2255, 0.0
    %v2306 = vmax.f32 %v2296, 0.0
    %v2307 = vmax.f32 %v2298, 0.0
    %v2308 = vmax.f32 %v2257, 0.0
    %v2309 = vmax.f32 %v2259, 0.0
    %v2310 = vmax.f32 %v2300, 0.0
    %v2311 = vmax.f32 %v2302, 0.0
    %v2312 = vpack.c.bf16 %v2308, %v2304
    %v2313 = vpack.c.bf16 %v2309, %v2305
    %v2314 = vpack.c.bf16 %v2310, %v2306
    %v2315 = vpack.c.bf16 %v2311, %v2307
    %v2316 = vld [vmem:[#allocation10] sm:$0xf]
    %v2317 = vld [vmem:[#allocation10 + $0x4] sm:$0xf]
    %v2318 = vld [vmem:[#allocation10 + $0x8] sm:$0xf]
    %v2319 = vld [vmem:[#allocation10 + $0xc] sm:$0xf]
    %v2320 = vld [vmem:[#allocation10 + $0x10] sm:$0xf]
    %v2321 = vld [vmem:[#allocation10 + $0x14] sm:$0xf]
    %v2322 = vld [vmem:[#allocation10 + $0x18] sm:$0xf]
    %v2323 = vld [vmem:[#allocation10 + $0x1c] sm:$0xf]
    %v2324 = vld [vmem:[#allocation10 + $0x20] sm:$0xf]
    %v2325 = vld [vmem:[#allocation10 + $0x24] sm:$0xf]
    %v2326 = vld [vmem:[#allocation10 + $0x28] sm:$0xf]
    %v2327 = vld [vmem:[#allocation10 + $0x2c] sm:$0xf]
    %v2328 = vld [vmem:[#allocation10 + $0x30] sm:$0xf]
    %v2329 = vld [vmem:[#allocation10 + $0x34] sm:$0xf]
    %v2330 = vld [vmem:[#allocation10 + $0x38] sm:$0xf]
    %v2331 = vld [vmem:[#allocation10 + $0x3c] sm:$0xf]
    %v2332 = vld [vmem:[#allocation10 + $0x40] sm:$0xf]
    %v2333 = vld [vmem:[#allocation10 + $0x44] sm:$0xf]
    %v2334 = vld [vmem:[#allocation10 + $0x48] sm:$0xf]
    %v2335 = vld [vmem:[#allocation10 + $0x4c] sm:$0xf]
    %v2336 = vld [vmem:[#allocation10 + $0x50] sm:$0xf]
    %v2337 = vld [vmem:[#allocation10 + $0x54] sm:$0xf]
    %v2338 = vld [vmem:[#allocation10 + $0x58] sm:$0xf]
    %v2339 = vld [vmem:[#allocation10 + $0x5c] sm:$0xf]
    %v2340 = vld [vmem:[#allocation10 + $0x60] sm:$0xf]
    %v2341 = vld [vmem:[#allocation10 + $0x64] sm:$0xf]
    %v2342 = vld [vmem:[#allocation10 + $0x68] sm:$0xf]
    %v2343 = vld [vmem:[#allocation10 + $0x6c] sm:$0xf]
    %v2344 = vld [vmem:[#allocation10 + $0x70] sm:$0xf]
    %v2345 = vld [vmem:[#allocation10 + $0x74] sm:$0xf]
    %v2346 = vld [vmem:[#allocation10 + $0x78] sm:$0xf]
    %v2347 = vld [vmem:[#allocation10 + $0x7c] sm:$0xf]
    %v2348 = vld [vmem:[#allocation10 + $0x80] sm:$0xf]
    %v2349 = vld [vmem:[#allocation10 + $0x84] sm:$0xf]
    %v2350 = vld [vmem:[#allocation10 + $0x88] sm:$0xf]
    %v2351 = vld [vmem:[#allocation10 + $0x8c] sm:$0xf]
    %v2352 = vld [vmem:[#allocation10 + $0x90] sm:$0xf]
    %v2353 = vld [vmem:[#allocation10 + $0x94] sm:$0xf]
    %v2354 = vld [vmem:[#allocation10 + $0x98] sm:$0xf]
    %v2355 = vld [vmem:[#allocation10 + $0x9c] sm:$0xf]
    %v2356 = vld [vmem:[#allocation10 + $0xa0] sm:$0xf]
    %v2357 = vld [vmem:[#allocation10 + $0xa4] sm:$0xf]
    %v2358 = vld [vmem:[#allocation10 + $0xa8] sm:$0xf]
    %v2359 = vld [vmem:[#allocation10 + $0xac] sm:$0xf]
    %v2360 = vld [vmem:[#allocation10 + $0xb0] sm:$0xf]
    %v2361 = vld [vmem:[#allocation10 + $0xb4] sm:$0xf]
    %v2362 = vld [vmem:[#allocation10 + $0xb8] sm:$0xf]
    %v2363 = vld [vmem:[#allocation10 + $0xbc] sm:$0xf]
    %v2364 = vld [vmem:[#allocation10 + $0xc0] sm:$0xf]
    %v2365 = vld [vmem:[#allocation10 + $0xc4] sm:$0xf]
    %v2366 = vld [vmem:[#allocation10 + $0xc8] sm:$0xf]
    %v2367 = vld [vmem:[#allocation10 + $0xcc] sm:$0xf]
    %v2368 = vld [vmem:[#allocation10 + $0xd0] sm:$0xf]
    %v2369 = vld [vmem:[#allocation10 + $0xd4] sm:$0xf]
    %v2370 = vld [vmem:[#allocation10 + $0xd8] sm:$0xf]
    %v2371 = vld [vmem:[#allocation10 + $0xdc] sm:$0xf]
    %v2372 = vld [vmem:[#allocation10 + $0xe0] sm:$0xf]
    %v2373 = vld [vmem:[#allocation10 + $0xe4] sm:$0xf]
    %v2374 = vld [vmem:[#allocation10 + $0xe8] sm:$0xf]
    %v2375 = vld [vmem:[#allocation10 + $0xec] sm:$0xf]
    %v2376 = vld [vmem:[%s12] sm:$0x1]
    %v2378 = vlaneseq
    %v2379 = vshrl.u32 %v2378, 7
    %v2380 = vsub.s32 0, %v2379
    %v2381 = vrot.slane %v2376, %v2380
    %v2443 = vunpack.c.l.b16 %v2316
    %v2444 = vunpack.c.l.b16 %v2317
    %v2445 = vunpack.c.l.b16 %v2318
    %v2446 = vunpack.c.l.b16 %v2319
    %v2447 = vunpack.c.l.b16 %v2320
    %v2448 = vunpack.c.l.b16 %v2321
    %v2449 = vunpack.c.l.b16 %v2322
    %v2450 = vunpack.c.l.b16 %v2323
    %v2451 = vunpack.c.l.b16 %v2324
    %v2452 = vunpack.c.l.b16 %v2325
    %v2453 = vunpack.c.l.b16 %v2326
    %v2454 = vunpack.c.l.b16 %v2327
    %v2455 = vunpack.c.l.b16 %v2328
    %v2456 = vunpack.c.l.b16 %v2329
    %v2457 = vunpack.c.l.b16 %v2330
    %v2458 = vunpack.c.l.b16 %v2331
    %v2459 = vunpack.c.l.b16 %v2332
    %v2460 = vunpack.c.l.b16 %v2333
    %v2461 = vunpack.c.l.b16 %v2334
    %v2462 = vunpack.c.l.b16 %v2335
    %v2463 = vunpack.c.l.b16 %v2336
    %v2464 = vunpack.c.l.b16 %v2337
    %v2465 = vunpack.c.l.b16 %v2338
    %v2466 = vunpack.c.l.b16 %v2339
    %v2467 = vunpack.c.l.b16 %v2340
    %v2468 = vunpack.c.l.b16 %v2341
    %v2469 = vunpack.c.l.b16 %v2342
    %v2470 = vunpack.c.l.b16 %v2343
    %v2471 = vunpack.c.l.b16 %v2344
    %v2472 = vunpack.c.l.b16 %v2345
    %v2473 = vunpack.c.l.b16 %v2346
    %v2474 = vunpack.c.l.b16 %v2347
    %v2475 = vunpack.c.l.b16 %v2348
    %v2476 = vunpack.c.l.b16 %v2349
    %v2477 = vunpack.c.l.b16 %v2350
    %v2478 = vunpack.c.l.b16 %v2351
    %v2479 = vunpack.c.l.b16 %v2352
    %v2480 = vunpack.c.l.b16 %v2353
    %v2481 = vunpack.c.l.b16 %v2354
    %v2482 = vunpack.c.l.b16 %v2355
    %v2483 = vunpack.c.l.b16 %v2356
    %v2484 = vunpack.c.l.b16 %v2357
    %v2485 = vunpack.c.l.b16 %v2358
    %v2486 = vunpack.c.l.b16 %v2359
    %v2487 = vunpack.c.l.b16 %v2360
    %v2488 = vunpack.c.l.b16 %v2361
    %v2489 = vunpack.c.l.b16 %v2362
    %v2490 = vunpack.c.l.b16 %v2363
    %v2491 = vunpack.c.l.b16 %v2364
    %v2492 = vunpack.c.l.b16 %v2365
    %v2493 = vunpack.c.l.b16 %v2366
    %v2494 = vunpack.c.l.b16 %v2367
    %v2495 = vunpack.c.l.b16 %v2368
    %v2496 = vunpack.c.l.b16 %v2369
    %v2497 = vunpack.c.l.b16 %v2370
    %v2498 = vunpack.c.l.b16 %v2371
    %v2499 = vunpack.c.l.b16 %v2372
    %v2500 = vunpack.c.l.b16 %v2373
    %v2501 = vunpack.c.l.b16 %v2374
    %v2502 = vunpack.c.l.b16 %v2375
    %v2503 = vpack.c.b16 %v2444, %v2443
    %v2504 = vpack.c.b16 %v2446, %v2445
    %v2505 = vpack.c.b16 %v2448, %v2447
    %v2506 = vpack.c.b16 %v2450, %v2449
    %v2507 = vpack.c.b16 %v2452, %v2451
    %v2508 = vpack.c.b16 %v2454, %v2453
    %v2509 = vpack.c.b16 %v2456, %v2455
    %v2510 = vpack.c.b16 %v2458, %v2457
    %v2511 = vpack.c.b16 %v2460, %v2459
    %v2512 = vpack.c.b16 %v2462, %v2461
    %v2513 = vpack.c.b16 %v2464, %v2463
    %v2514 = vpack.c.b16 %v2466, %v2465
    %v2515 = vpack.c.b16 %v2468, %v2467
    %v2516 = vpack.c.b16 %v2470, %v2469
    %v2517 = vpack.c.b16 %v2472, %v2471
    %v2518 = vpack.c.b16 %v2474, %v2473
    %v2519 = vpack.c.b16 %v2476, %v2475
    %v2520 = vpack.c.b16 %v2478, %v2477
    %v2521 = vpack.c.b16 %v2480, %v2479
    %v2522 = vpack.c.b16 %v2482, %v2481
    %v2523 = vpack.c.b16 %v2484, %v2483
    %v2524 = vpack.c.b16 %v2486, %v2485
    %v2525 = vpack.c.b16 %v2488, %v2487
    %v2526 = vpack.c.b16 %v2490, %v2489
    %v2527 = vpack.c.b16 %v2492, %v2491
    %v2528 = vpack.c.b16 %v2494, %v2493
    %v2529 = vpack.c.b16 %v2496, %v2495
    %v2530 = vpack.c.b16 %v2498, %v2497
    %v2531 = vpack.c.b16 %v2500, %v2499
    %v2532 = vpack.c.b16 %v2502, %v2501
    %vm2563 = vcmask 785408
    %v2565 = vsel %vm2563, %v2315, 0
    %2567 = vmatprep.subr.bf16.mxu0 0
    %2568 = vmatpush1.bf16.msra.mxu0 %v2510
    %2569 = vmatprep.subr.bf16.mxu0 0
    %2570 = vmatpush1.bf16.msra.mxu0 %v2509
    %2571 = vmatprep.subr.bf16.mxu0 0
    %2572 = vmatpush1.bf16.msra.mxu0 %v2508
    %2573 = vmatprep.subr.bf16.mxu0 0
    %2574 = vmatpush1.bf16.msra.mxu0 %v2507
    %2575 = vmatprep.subr.bf16.mxu0 0
    %2576 = vmatpush1.bf16.msra.mxu0 %v2506
    %2577 = vmatprep.subr.bf16.mxu0 0
    %2578 = vmatpush1.bf16.msra.mxu0 %v2505
    %2579 = vmatprep.subr.bf16.mxu0 0
    %2580 = vmatpush1.bf16.msra.mxu0 %v2504
    %2581 = vmatprep.subr.bf16.mxu0 0
    %2582 = vmatpush1.bf16.msra.mxu0 %v2503
    %2583 = vmatprep.subr.bf16.mxu0 0
    %2584 = vmatpush2.bf16.msra.mxu0 %v2518
    %2585 = vmatprep.subr.bf16.mxu0 0
    %2586 = vmatpush2.bf16.msra.mxu0 %v2517
    %2587 = vmatprep.subr.bf16.mxu0 0
    %2588 = vmatpush2.bf16.msra.mxu0 %v2516
    %2589 = vmatprep.subr.bf16.mxu0 0
    %2590 = vmatpush2.bf16.msra.mxu0 %v2515
    %2591 = vmatprep.subr.bf16.mxu0 0
    %2592 = vmatpush2.bf16.msra.mxu0 %v2514
    %2593 = vmatprep.subr.bf16.mxu0 0
    %2594 = vmatpush2.bf16.msra.mxu0 %v2513
    %2595 = vmatprep.subr.bf16.mxu0 0
    %2596 = vmatpush2.bf16.msra.mxu0 %v2512
    %2597 = vmatprep.subr.bf16.mxu0 0
    %2598 = vmatpush2.bf16.msra.mxu0 %v2511
    %2599 = vmatprep.mubr.bf16.mxu0 %v2313
    %2600 = vmatmul.mubr.bf16.gmra.mxu0 %v2312
    %v2601 = vpop.f32.mrf.mxu0
    %v2602 = vadd.f32 %v2381, %v2601
    %v2603 = vpop.f32.mrf.mxu0
    %v2604 = vpop.f32.mrf.mxu0
    %v2605 = vadd.f32 %v2381, %v2604
    %v2606 = vpop.f32.mrf.mxu0
    %2607 = vdwg.mxu0
    %2608 = vmatprep.subr.bf16.mxu0 0
    %2609 = vmatpush1.bf16.msra.mxu0 %v2526
    %2610 = vmatprep.subr.bf16.mxu0 0
    %2611 = vmatpush1.bf16.msra.mxu0 %v2525
    %2612 = vmatprep.subr.bf16.mxu0 0
    %2613 = vmatpush1.bf16.msra.mxu0 %v2524
    %2614 = vmatprep.subr.bf16.mxu0 0
    %2615 = vmatpush1.bf16.msra.mxu0 %v2523
    %2616 = vmatprep.subr.bf16.mxu0 0
    %2617 = vmatpush1.bf16.msra.mxu0 %v2522
    %2618 = vmatprep.subr.bf16.mxu0 0
    %2619 = vmatpush1.bf16.msra.mxu0 %v2521
    %2620 = vmatprep.subr.bf16.mxu0 0
    %2621 = vmatpush1.bf16.msra.mxu0 %v2520
    %2622 = vmatprep.subr.bf16.mxu0 0
    %2623 = vmatpush1.bf16.msra.mxu0 %v2519
    %2624 = vmatprep.subr.bf16.mxu0 0
    %2625 = vmatpush2.bf16.msra.mxu0 0
    %2626 = vmatprep.subr.bf16.mxu0 0
    %2627 = vmatpush2.bf16.msra.mxu0 0
    %2628 = vmatprep.subr.bf16.mxu0 0
    %2629 = vmatpush2.bf16.msra.mxu0 %v2532
    %2630 = vmatprep.subr.bf16.mxu0 0
    %2631 = vmatpush2.bf16.msra.mxu0 %v2531
    %2632 = vmatprep.subr.bf16.mxu0 0
    %2633 = vmatpush2.bf16.msra.mxu0 %v2530
    %2634 = vmatprep.subr.bf16.mxu0 0
    %2635 = vmatpush2.bf16.msra.mxu0 %v2529
    %2636 = vmatprep.subr.bf16.mxu0 0
    %2637 = vmatpush2.bf16.msra.mxu0 %v2528
    %2638 = vmatprep.subr.bf16.mxu0 0
    %2639 = vmatpush2.bf16.msra.mxu0 %v2527
    %2640 = vmatprep.mubr.bf16.mxu0 %v2565
    %2641 = vmatmul.mubr.bf16.gmra.mxu0 %v2314
    %v2642 = vpop.f32.mrf.mxu0
    %v2643 = vadd.f32 %v2602, %v2642
    %v2644 = vpop.f32.mrf.mxu0
    %v2645 = vpop.f32.mrf.mxu0
    %v2646 = vadd.f32 %v2605, %v2645
    %v2647 = vpop.f32.mrf.mxu0
    %2648 = vdwg.mxu0
    %v2649 = vadd.f32 %v1954, %v2643
    %v2650 = vadd.f32 %v1955, %v2646
    %2651 = vst.msk [vmem:[#allocation11] sm:$0xff] %vm118, %v2649
    %2652 = vst.msk [vmem:[#allocation11 + $0x8] sm:$0xff] %vm118, %v2650
    // Predicated region
    $region74: #{transformer_block.1} parent=1 // pred_check
      _
    $region75: #{transformer_block.1} parent=1 // pred_check_branch
      %2654 = sbr.rel (0) target = $region77
    $region76: #{transformer_block.1} parent=1 // pred_region
      %s2656 = ssub.s32 256, 256
      %2657 = vsyncadd [#allocation4], %s2656
      %s2658 = sshll.u32 [#allocation11], 4
      %s2659 = int_to_ptr.vmem [resolvable:$true] %s2658
      %2664 = dma.vmem_to_hbm [thread:$0]  %s2659, 256, %s13, [#allocation4], 128, 128, 8
    $region77: #{transformer_block.1} parent=1 // pred_fallthru
      _
    // Predicated region
    $region78: #{transformer_block.1} parent=1 // pred_check
      _
    $region79: #{transformer_block.1} parent=1 // pred_check_branch
      %2666 = sbr.rel (0) target = $region81
    $region80: #{transformer_block.1} parent=1 // pred_region
      %2667 = dma.done [#allocation4], 256
    $region81: #{transformer_block.1} parent=1 // pred_fallthru
      _
    %2668 = vsyncpa [#allocation3], 1
    %2669 = vsyncpa [#allocation6], 1
    %2670 = vsyncpa [#allocation9], 1
    %2671 = vsyncpa [#allocation4], 1

</llo_original>
